<compile_context>
chip_gen: v7x
topology: tpu7x:2x2x1
jax: 0.10.0
libtpu: 0.0.40
codegen_flags: <defaults>
</compile_context>

<pallas_src>
import jax
import jax.numpy as jnp
from jax.experimental import pallas as pl
from jax.experimental.pallas import tpu as pltpu


OUT_LANES = 8  # output slab width (== full array last dim; sliced to 1 outside)


# ----------------------------- Pallas kernel -------------------------------
def gcn_block_kernel(a_ref, x_ref, p_ref,
                     w1_ref, b1_ref,
                     w2_ref, b2_ref,
                     wl1_ref, bl1_ref,
                     wl2_ref, bl2_ref,
                     out_ref):
    f32, bf16 = jnp.float32, jnp.bfloat16

    a = a_ref[0]            # (N, N)  bf16 block-diagonal normalized adjacency
    x = x_ref[...]          # (N, Fp) bf16 node features for this block of graphs

    # ---- GCNConv 1: relu(A_hat @ (X @ W1) + b1) -----------------------------
    xw = jnp.dot(x, w1_ref[...], preferred_element_type=f32)          # (N, H)
    h = jnp.dot(a, xw.astype(bf16), preferred_element_type=f32)       # (N, H)
    h = jnp.maximum(h + b1_ref[...], 0.0)

    # ---- GCNConv 2: relu(A_hat @ (H @ W2) + b2) -----------------------------
    hw = jnp.dot(h.astype(bf16), w2_ref[...], preferred_element_type=f32)
    h = jnp.dot(a, hw.astype(bf16), preferred_element_type=f32)
    h = jnp.maximum(h + b2_ref[...], 0.0)

    # ---- global_mean_pool: lane-dense masked pool matrix (gb, N) @ (N, H) ---
    # P is zero on padded nodes and 1/|g| on valid nodes -> exact masked mean.
    pooled = jnp.dot(p_ref[...], h, preferred_element_type=f32)       # (gb, H)

    # ---- MLP head: Linear -> ReLU -> Linear(H, 1) ----------------------------
    z = jnp.dot(pooled.astype(bf16), wl1_ref[...], preferred_element_type=f32)
    z = jnp.maximum(z + bl1_ref[...], 0.0)                            # (gb, H)
    # final linear as VPU multiply + lane reduction (no 1-lane MXU op)
    y = jnp.sum(z * wl2_ref[...], axis=-1, keepdims=True) + bl2_ref[0, 0]
    out_ref[...] = jnp.broadcast_to(y, out_ref.shape)                 # (gb, 8)


def gcn_forward(a_blk, x_flat, p_flat, padded_params, *, graphs_per_block):
    """a_blk:  [num_blocks, N, N] bf16 block-diagonal GCN operator (N=gb*n_pg)
       x_flat: [num_graphs*n_pg, F_pad] bf16 padded node features
       p_flat: [num_graphs, N] f32 masked mean-pool matrix."""
    w1, b1, w2, b2, wl1, bl1, wl2_row, bl2 = padded_params
    num_blocks, n_blk, _ = a_blk.shape
    f_pad = x_flat.shape[1]
    h_pad = w1.shape[1]
    gb = graphs_per_block
    num_graphs = num_blocks * gb
    assert p_flat.shape == (num_graphs, n_blk)
    assert x_flat.shape[0] == num_blocks * n_blk

    in_specs = [
        pl.BlockSpec((1, n_blk, n_blk), lambda i: (i, 0, 0)),   # A_blk (block-diag)
        pl.BlockSpec((n_blk, f_pad), lambda i: (i, 0)),         # X (flattened rows)
        pl.BlockSpec((gb, n_blk), lambda i: (i, 0)),            # pool matrix
        pl.BlockSpec((f_pad, h_pad), lambda i: (0, 0)),         # W1
        pl.BlockSpec((1, h_pad), lambda i: (0, 0)),             # b1
        pl.BlockSpec((h_pad, h_pad), lambda i: (0, 0)),         # W2
        pl.BlockSpec((1, h_pad), lambda i: (0, 0)),             # b2
        pl.BlockSpec((h_pad, h_pad), lambda i: (0, 0)),         # W_lin1
        pl.BlockSpec((1, h_pad), lambda i: (0, 0)),             # b_lin1
        pl.BlockSpec((1, h_pad), lambda i: (0, 0)),             # w_lin2 (row vec)
        pl.BlockSpec(memory_space=pltpu.MemorySpace.SMEM),      # b_lin2 scalar
    ]
    # NOTE: if graphs_per_block is pushed up (block-diag A >= a few MiB), set
    # pltpu.CompilerParams(vmem_limit_bytes=...) explicitly (v7x: 64 MiB phys /
    # 32 MiB default scoped; v5e: 16 MiB default scoped).
    out = pl.pallas_call(
        gcn_block_kernel,
        out_shape=jax.ShapeDtypeStruct((num_graphs, OUT_LANES), jnp.float32),
        grid=(num_blocks,),
        in_specs=in_specs,
        out_specs=pl.BlockSpec((gb, OUT_LANES), lambda i: (i, 0)),
        compiler_params=pltpu.CompilerParams(
            dimension_semantics=("parallel",)),
    )(a_blk, x_flat, p_flat, w1, b1, w2, b2, wl1, bl1, wl2_row, bl2)
    return out[:, :1]                                           # [G, 1]


# ------------------------------- JAX glue ----------------------------------
def build_per_graph_operators(edge_index, batch, num_graphs, n_pg):
    """Per-graph padded GCN operator A_hat[g] = D^-1/2 (A_g + I) D^-1/2 and
    mean-pool weights (1/|g| on valid nodes, 0 on padding). Assumes PyG-style
    batching (node ids contiguous per graph)."""
    counts = jnp.sum(batch[None, :] == jnp.arange(num_graphs)[:, None], axis=1)
    offsets = jnp.concatenate([jnp.zeros((1,), counts.dtype),
                               jnp.cumsum(counts)[:-1]])
    src, dst = edge_index[0], edge_index[1]
    g_e = batch[src]
    lsrc = src - offsets[g_e]
    ldst = dst - offsets[g_e]
    a = jnp.zeros((num_graphs, n_pg, n_pg), jnp.float32).at[g_e, ldst, lsrc].add(1.0)
    node = jnp.arange(n_pg)
    valid = (node[None, :] < counts[:, None]).astype(jnp.float32)          # [G, n_pg]
    a = a + jnp.eye(n_pg, dtype=jnp.float32)[None] * valid[:, None, :]     # self loops
    deg = jnp.sum(a, axis=2)
    dinv = jnp.where(deg > 0, 1.0 / jnp.sqrt(deg), 0.0)
    a_hat = dinv[:, :, None] * a * dinv[:, None, :]                        # [G, n, n]
    poolw = valid / jnp.maximum(counts[:, None].astype(jnp.float32), 1.0)  # [G, n]
    return a_hat, poolw, counts, offsets


def assemble_blocks(a_hat_g, poolw, graphs_per_block):
    """Block-diagonal A per grid step (bf16) and a lane-dense pool matrix."""
    num_graphs, n, _ = a_hat_g.shape
    gb = graphs_per_block
    nb = num_graphs // gb
    n_blk = gb * n
    eye = jnp.eye(gb, dtype=jnp.float32)
    a5 = a_hat_g.reshape(nb, gb, n, n)
    # A_blk[b, g*n+i, h*n+j] = A_hat[b*gb+g, i, j] * (g == h)
    a_blk = jnp.einsum('bgij,gh->bgihj', a5, eye).reshape(nb, n_blk, n_blk)
    # P[b*gb+g, h*n+j] = poolw[b*gb+g, j] * (g == h)
    p4 = poolw.reshape(nb, gb, n)[:, :, None, :] * eye[None, :, :, None]
    p_flat = p4.reshape(num_graphs, n_blk)
    return a_blk.astype(jnp.bfloat16), p_flat.astype(jnp.float32)


def pad_node_features(x, batch, offsets, num_graphs, n_pg, f_pad):
    n, f = x.shape
    local = jnp.arange(n) - offsets[batch]
    rows = batch * n_pg + local
    x_wide = jnp.pad(x, ((0, 0), (0, f_pad - f)))
    xp = jnp.zeros((num_graphs * n_pg, f_pad), jnp.float32)
    return xp.at[rows].set(x_wide)


def init_params(key, in_feats, hidden):
    ks = jax.random.split(key, 6)

    def glorot(k, shape):
        lim = jnp.sqrt(6.0 / (shape[0] + shape[1]))
        return jax.random.uniform(k, shape, jnp.float32, -lim, lim)

    w1 = glorot(ks[0], (in_feats, hidden))
    b1 = jnp.zeros((1, hidden), jnp.float32)
    w2 = glorot(ks[1], (hidden, hidden))
    b2 = jnp.zeros((1, hidden), jnp.float32)
    wl1 = glorot(ks[2], (hidden, hidden))
    bl1 = 0.01 * jax.random.normal(ks[3], (1, hidden), jnp.float32)
    wl2 = glorot(ks[4], (hidden, 1))
    bl2 = 0.01 * jax.random.normal(ks[5], (1, 1), jnp.float32)
    return (w1, b1, w2, b2, wl1, bl1, wl2, bl2)


def pad_params(params, f_pad, h_pad):
    """Zero-pad parameters to MXU-friendly shapes; matmul weights in bf16."""
    w1, b1, w2, b2, wl1, bl1, wl2, bl2 = params
    bf16 = jnp.bfloat16

    def pad2(w, r, c):
        return jnp.zeros((r, c), jnp.float32).at[:w.shape[0], :w.shape[1]].set(w)

    return (pad2(w1, f_pad, h_pad).astype(bf16),   # W1  (F_pad=16 -> no dead K)
            pad2(b1, 1, h_pad),                    # b1 (f32)
            pad2(w2, h_pad, h_pad).astype(bf16),   # W2
            pad2(b2, 1, h_pad),                    # b2 (f32)
            pad2(wl1, h_pad, h_pad).astype(bf16),  # W_lin1
            pad2(bl1, 1, h_pad),                   # b_lin1 (f32)
            pad2(wl2.T, 1, h_pad),                 # w_lin2 row (f32, VPU reduce)
            bl2.reshape(1, 1))                     # b_lin2 scalar (SMEM)


# -------- plain-JAX reference (mirrors the original PyTorch module) ---------
def build_gcn_norm_adj(edge_index, num_nodes):
    src, dst = edge_index[0], edge_index[1]
    a = jnp.zeros((num_nodes, num_nodes), jnp.float32).at[dst, src].add(1.0)
    a = a + jnp.eye(num_nodes, dtype=jnp.float32)
    deg = jnp.sum(a, axis=1)
    dinv = jnp.where(deg > 0, 1.0 / jnp.sqrt(deg), 0.0)
    return dinv[:, None] * a * dinv[None, :]


def build_mean_pool_matrix(batch, num_nodes, num_graphs):
    onehot = (batch[None, :] == jnp.arange(num_graphs)[:, None]).astype(jnp.float32)
    counts = jnp.maximum(jnp.sum(onehot, axis=1, keepdims=True), 1.0)
    return onehot / counts


def reference_forward(x, edge_index, batch, num_nodes, num_graphs, params):
    (w1, b1, w2, b2, wl1, bl1, wl2, bl2) = params
    a_hat = build_gcn_norm_adj(edge_index, num_nodes)
    pool = build_mean_pool_matrix(batch, num_nodes, num_graphs)
    h = jnp.maximum(a_hat @ (x @ w1) + b1, 0.0)
    h = jnp.maximum(a_hat @ (h @ w2) + b2, 0.0)
    g = pool @ h
    g = jnp.maximum(g @ wl1 + bl1, 0.0)
    return g @ wl2 + bl2


# --------------------------------- main -------------------------------------
if __name__ == "__main__":
    key = jax.random.PRNGKey(0)
    k_x, k_p = jax.random.split(key)

    in_feats = 11
    hidden = 32
    n_pg = 16                # padded nodes per graph (multiple of 8)
    graphs_per_block = 16    # gb*n_pg = 256 rows per block-diag matmul (v6e/v7x MXU)
    num_graphs = 128         # grid = (8,): >=4 steps per TC on v7x megacore
    F_PAD, H_PAD = 16, 128   # tight feature pad (bf16 sublane pack), lane-wide hidden

    # Ring graphs of alternating size 12 / 16, PyG-style contiguous node ids.
    sizes = [12 if g % 2 == 0 else 16 for g in range(num_graphs)]
    srcs, dsts, batch_list = [], [], []
    off = 0
    for g, sz in enumerate(sizes):
        for i in range(sz):
            u, v = off + i, off + (i + 1) % sz
            srcs += [u, v]
            dsts += [v, u]
        batch_list += [g] * sz
        off += sz
    num_nodes = off
    edge_index = jnp.array([srcs, dsts], dtype=jnp.int32)
    batch = jnp.array(batch_list, dtype=jnp.int32)

    x = jax.random.normal(k_x, (num_nodes, in_feats), jnp.float32)
    params = init_params(k_p, in_feats, hidden)

    # Dense per-graph operators -> block-diagonal operator + pool matrix.
    a_hat_g, poolw, counts, offsets = build_per_graph_operators(
        edge_index, batch, num_graphs, n_pg)
    # Guard against silently-dropped scatter indices (graph larger than n_pg).
    assert int(jnp.max(counts)) <= n_pg, "graph has more nodes than n_pg"
    assert num_graphs % graphs_per_block == 0

    a_blk, p_flat = assemble_blocks(a_hat_g, poolw, graphs_per_block)
    x_flat = pad_node_features(
        x, batch, offsets, num_graphs, n_pg, F_PAD).astype(jnp.bfloat16)
    padded_params = pad_params(params, F_PAD, H_PAD)

    out = gcn_forward(a_blk, x_flat, p_flat, padded_params,
                      graphs_per_block=graphs_per_block)
    out = jax.block_until_ready(out)

    ref = reference_forward(x, edge_index, batch, num_nodes, num_graphs, params)
    assert out.shape == (num_graphs, 1)
    # bf16 MXU inputs (incl. A_hat) with f32 accumulation -> bf16-level tolerance.
    # TODO(synk): for very deep / large graphs, keep A_hat in f32 if tighter
    # accuracy is required.
    assert jnp.allclose(out, ref, atol=5e-2, rtol=5e-2), (out, ref)

    print("KERNEL_OK")
</pallas_src>

<mosaic_0001>
module attributes {stable_mosaic.version = 11 : i64} {
  func.func @gcn_block_kernel(%arg0: i32, %arg1: memref<1x256x256xbf16, #tpu.memory_space<vmem>>, %arg2: memref<256x16xbf16, #tpu.memory_space<vmem>>, %arg3: memref<16x256xf32, #tpu.memory_space<vmem>>, %arg4: memref<16x128xbf16, #tpu.memory_space<vmem>>, %arg5: memref<1x128xf32, #tpu.memory_space<vmem>>, %arg6: memref<128x128xbf16, #tpu.memory_space<vmem>>, %arg7: memref<1x128xf32, #tpu.memory_space<vmem>>, %arg8: memref<128x128xbf16, #tpu.memory_space<vmem>>, %arg9: memref<1x128xf32, #tpu.memory_space<vmem>>, %arg10: memref<1x128xf32, #tpu.memory_space<vmem>>, %arg11: memref<1x1xf32, #tpu.memory_space<smem>>, %arg12: memref<16x8xf32, #tpu.memory_space<vmem>>) attributes {dimension_semantics = [#tpu.dimension_semantics<parallel>], iteration_bounds = array<i64: 8>, scalar_prefetch = 0 : i64, scratch_operands = 0 : i64, tpu.core_type = #tpu.core_type<tc>, window_params = [{transform_indices = @transform_0, window_bounds = array<i64: 1, 256, 256>}, {transform_indices = @transform_1, window_bounds = array<i64: 256, 16>}, {transform_indices = @transform_2, window_bounds = array<i64: 16, 256>}, {pipeline_mode = #tpu.pipeline_mode<synchronous>, transform_indices = @transform_3, window_bounds = array<i64: 16, 128>}, {pipeline_mode = #tpu.pipeline_mode<synchronous>, transform_indices = @transform_4, window_bounds = array<i64: 1, 128>}, {pipeline_mode = #tpu.pipeline_mode<synchronous>, transform_indices = @transform_5, window_bounds = array<i64: 128, 128>}, {pipeline_mode = #tpu.pipeline_mode<synchronous>, transform_indices = @transform_6, window_bounds = array<i64: 1, 128>}, {pipeline_mode = #tpu.pipeline_mode<synchronous>, transform_indices = @transform_7, window_bounds = array<i64: 128, 128>}, {pipeline_mode = #tpu.pipeline_mode<synchronous>, transform_indices = @transform_8, window_bounds = array<i64: 1, 128>}, {pipeline_mode = #tpu.pipeline_mode<synchronous>, transform_indices = @transform_9, window_bounds = array<i64: 1, 128>}, {transform_indices = @transform_10, window_bounds = array<i64: 1, 1>}, {transform_indices = @transform_11, window_bounds = array<i64: 16, 8>}]} {
    %c0 = arith.constant 0 : index
    %c0_0 = arith.constant 0 : index
    %c0_1 = arith.constant 0 : index
    %0 = vector.load %arg1[%c0, %c0_0, %c0_1] : memref<1x256x256xbf16, #tpu.memory_space<vmem>>, vector<1x256x256xbf16>
    %1 = vector.shape_cast %0 : vector<1x256x256xbf16> to vector<256x256xbf16>
    %c0_2 = arith.constant 0 : index
    %c0_3 = arith.constant 0 : index
    %2 = vector.load %arg2[%c0_2, %c0_3] : memref<256x16xbf16, #tpu.memory_space<vmem>>, vector<256x16xbf16>
    %c0_4 = arith.constant 0 : index
    %c0_5 = arith.constant 0 : index
    %3 = vector.load %arg4[%c0_4, %c0_5] : memref<16x128xbf16, #tpu.memory_space<vmem>>, vector<16x128xbf16>
    %cst = arith.constant dense<0.000000e+00> : vector<256x128xf32>
    %4 = tpu.matmul %2, %3, %cst {dimension_numbers = #tpu.dot_dimension_numbers<[1], [0], [0], [1], [0, 0, 1, 1], [], []>} : vector<256x16xbf16>, vector<16x128xbf16>, vector<256x128xf32> -> vector<256x128xf32>
    %5 = arith.truncf %4 : vector<256x128xf32> to vector<256x128xbf16>
    %cst_6 = arith.constant dense<0.000000e+00> : vector<256x128xf32>
    %6 = tpu.matmul %1, %5, %cst_6 {dimension_numbers = #tpu.dot_dimension_numbers<[1], [0], [0], [1], [0, 0, 1, 1], [], []>} : vector<256x256xbf16>, vector<256x128xbf16>, vector<256x128xf32> -> vector<256x128xf32>
    %c0_7 = arith.constant 0 : index
    %c0_8 = arith.constant 0 : index
    %7 = vector.load %arg5[%c0_7, %c0_8] : memref<1x128xf32, #tpu.memory_space<vmem>>, vector<1x128xf32>
    %8 = vector.broadcast %7 : vector<1x128xf32> to vector<256x128xf32>
    %9 = arith.addf %6, %8 : vector<256x128xf32>
    %cst_9 = arith.constant 0.000000e+00 : f32
    %10 = vector.broadcast %cst_9 : f32 to vector<256x128xf32>
    %11 = arith.maximumf %9, %10 : vector<256x128xf32>
    %12 = arith.truncf %11 : vector<256x128xf32> to vector<256x128xbf16>
    %c0_10 = arith.constant 0 : index
    %c0_11 = arith.constant 0 : index
    %13 = vector.load %arg6[%c0_10, %c0_11] : memref<128x128xbf16, #tpu.memory_space<vmem>>, vector<128x128xbf16>
    %cst_12 = arith.constant dense<0.000000e+00> : vector<256x128xf32>
    %14 = tpu.matmul %12, %13, %cst_12 {dimension_numbers = #tpu.dot_dimension_numbers<[1], [0], [0], [1], [0, 0, 1, 1], [], []>} : vector<256x128xbf16>, vector<128x128xbf16>, vector<256x128xf32> -> vector<256x128xf32>
    %15 = arith.truncf %14 : vector<256x128xf32> to vector<256x128xbf16>
    %cst_13 = arith.constant dense<0.000000e+00> : vector<256x128xf32>
    %16 = tpu.matmul %1, %15, %cst_13 {dimension_numbers = #tpu.dot_dimension_numbers<[1], [0], [0], [1], [0, 0, 1, 1], [], []>} : vector<256x256xbf16>, vector<256x128xbf16>, vector<256x128xf32> -> vector<256x128xf32>
    %c0_14 = arith.constant 0 : index
    %c0_15 = arith.constant 0 : index
    %17 = vector.load %arg7[%c0_14, %c0_15] : memref<1x128xf32, #tpu.memory_space<vmem>>, vector<1x128xf32>
    %18 = vector.broadcast %17 : vector<1x128xf32> to vector<256x128xf32>
    %19 = arith.addf %16, %18 : vector<256x128xf32>
    %cst_16 = arith.constant 0.000000e+00 : f32
    %20 = vector.broadcast %cst_16 : f32 to vector<256x128xf32>
    %21 = arith.maximumf %19, %20 : vector<256x128xf32>
    %c0_17 = arith.constant 0 : index
    %c0_18 = arith.constant 0 : index
    %22 = vector.load %arg3[%c0_17, %c0_18] : memref<16x256xf32, #tpu.memory_space<vmem>>, vector<16x256xf32>
    %cst_19 = arith.constant dense<0.000000e+00> : vector<16x128xf32>
    %23 = tpu.matmul %22, %21, %cst_19 {dimension_numbers = #tpu.dot_dimension_numbers<[1], [0], [0], [1], [0, 0, 1, 1], [], []>} : vector<16x256xf32>, vector<256x128xf32>, vector<16x128xf32> -> vector<16x128xf32>
    %24 = arith.truncf %23 : vector<16x128xf32> to vector<16x128xbf16>
    %c0_20 = arith.constant 0 : index
    %c0_21 = arith.constant 0 : index
    %25 = vector.load %arg8[%c0_20, %c0_21] : memref<128x128xbf16, #tpu.memory_space<vmem>>, vector<128x128xbf16>
    %cst_22 = arith.constant dense<0.000000e+00> : vector<16x128xf32>
    %26 = tpu.matmul %24, %25, %cst_22 {dimension_numbers = #tpu.dot_dimension_numbers<[1], [0], [0], [1], [0, 0, 1, 1], [], []>} : vector<16x128xbf16>, vector<128x128xbf16>, vector<16x128xf32> -> vector<16x128xf32>
    %c0_23 = arith.constant 0 : index
    %c0_24 = arith.constant 0 : index
    %27 = vector.load %arg9[%c0_23, %c0_24] : memref<1x128xf32, #tpu.memory_space<vmem>>, vector<1x128xf32>
    %28 = vector.broadcast %27 : vector<1x128xf32> to vector<16x128xf32>
    %29 = arith.addf %26, %28 : vector<16x128xf32>
    %cst_25 = arith.constant 0.000000e+00 : f32
    %30 = vector.broadcast %cst_25 : f32 to vector<16x128xf32>
    %31 = arith.maximumf %29, %30 : vector<16x128xf32>
    %c0_26 = arith.constant 0 : index
    %c0_27 = arith.constant 0 : index
    %32 = vector.load %arg10[%c0_26, %c0_27] : memref<1x128xf32, #tpu.memory_space<vmem>>, vector<1x128xf32>
    %33 = vector.broadcast %32 : vector<1x128xf32> to vector<16x128xf32>
    %34 = arith.mulf %31, %33 : vector<16x128xf32>
    %cst_28 = arith.constant dense<0.000000e+00> : vector<16xf32>
    %35 = vector.multi_reduction <add>, %34, %cst_28 [1] : vector<16x128xf32> to vector<16xf32>
    %36 = vector.shape_cast %35 : vector<16xf32> to vector<16x1xf32>
    %c0_29 = arith.constant 0 : index
    %c0_30 = arith.constant 0 : index
    %37 = memref.load %arg11[%c0_29, %c0_30] : memref<1x1xf32, #tpu.memory_space<smem>>
    %38 = vector.broadcast %37 : f32 to vector<16x1xf32>
    %39 = arith.addf %36, %38 : vector<16x1xf32>
    %40 = vector.shape_cast %39 : vector<16x1xf32> to vector<16x1xf32>
    %41 = vector.broadcast %40 : vector<16x1xf32> to vector<16x8xf32>
    %c0_31 = arith.constant 0 : index
    %c0_32 = arith.constant 0 : index
    %42 = vector.load %arg12[%c0_31, %c0_32] : memref<16x8xf32, #tpu.memory_space<vmem>>, vector<16x8xf32>
    tpu.vector_store %arg12[%c0_31, %c0_32], %41 {strides = array<i32>} : memref<16x8xf32, #tpu.memory_space<vmem>>, vector<16x8xf32>,
    return
  }
  func.func @transform_0(%arg0: i32) -> (i32, i32, i32) {
    %c0_i32 = arith.constant 0 : i32
    %c0_i32_0 = arith.constant 0 : i32
    %c0_i32_1 = arith.constant 0 : i32
    return %arg0, %c0_i32, %c0_i32_0 : i32, i32, i32
  }
  func.func @transform_1(%arg0: i32) -> (i32, i32) {
    %c0_i32 = arith.constant 0 : i32
    %c0_i32_0 = arith.constant 0 : i32
    return %arg0, %c0_i32 : i32, i32
  }
  func.func @transform_2(%arg0: i32) -> (i32, i32) {
    %c0_i32 = arith.constant 0 : i32
    %c0_i32_0 = arith.constant 0 : i32
    return %arg0, %c0_i32 : i32, i32
  }
  func.func @transform_3(%arg0: i32) -> (i32, i32) {
    %c0_i32 = arith.constant 0 : i32
    %c0_i32_0 = arith.constant 0 : i32
    %c0_i32_1 = arith.constant 0 : i32
    return %c0_i32, %c0_i32_0 : i32, i32
  }
  func.func @transform_4(%arg0: i32) -> (i32, i32) {
    %c0_i32 = arith.constant 0 : i32
    %c0_i32_0 = arith.constant 0 : i32
    %c0_i32_1 = arith.constant 0 : i32
    return %c0_i32, %c0_i32_0 : i32, i32
  }
  func.func @transform_5(%arg0: i32) -> (i32, i32) {
    %c0_i32 = arith.constant 0 : i32
    %c0_i32_0 = arith.constant 0 : i32
    %c0_i32_1 = arith.constant 0 : i32
    return %c0_i32, %c0_i32_0 : i32, i32
  }
  func.func @transform_6(%arg0: i32) -> (i32, i32) {
    %c0_i32 = arith.constant 0 : i32
    %c0_i32_0 = arith.constant 0 : i32
    %c0_i32_1 = arith.constant 0 : i32
    return %c0_i32, %c0_i32_0 : i32, i32
  }
  func.func @transform_7(%arg0: i32) -> (i32, i32) {
    %c0_i32 = arith.constant 0 : i32
    %c0_i32_0 = arith.constant 0 : i32
    %c0_i32_1 = arith.constant 0 : i32
    return %c0_i32, %c0_i32_0 : i32, i32
  }
  func.func @transform_8(%arg0: i32) -> (i32, i32) {
    %c0_i32 = arith.constant 0 : i32
    %c0_i32_0 = arith.constant 0 : i32
    %c0_i32_1 = arith.constant 0 : i32
    return %c0_i32, %c0_i32_0 : i32, i32
  }
  func.func @transform_9(%arg0: i32) -> (i32, i32) {
    %c0_i32 = arith.constant 0 : i32
    %c0_i32_0 = arith.constant 0 : i32
    %c0_i32_1 = arith.constant 0 : i32
    return %c0_i32, %c0_i32_0 : i32, i32
  }
  func.func @transform_10(%arg0: i32) -> (i32, i32) {
    %c0_i32 = arith.constant 0 : i32
    %c0_i32_0 = arith.constant 0 : i32
    %c0_i32_1 = arith.constant 0 : i32
    return %c0_i32, %c0_i32_0 : i32, i32
  }
  func.func @transform_11(%arg0: i32) -> (i32, i32) {
    %c0_i32 = arith.constant 0 : i32
    %c0_i32_0 = arith.constant 0 : i32
    return %arg0, %c0_i32 : i32, i32
  }
}

</mosaic_0001>

<llo_original>
// kernel: tpu_custom_call.1
$region0: #{tpu_custom_call.1}
  #allocation0 [shape = 'u32[]', space=smem, size = 0x4, offset = 0x4, fixed_abs, tag = 'smem constant byte address 0x4 - core index']
  #allocation1 [shape = 'u32[144,128]{1,0:T(1,128)}', space=vmem, size = 0x12000, scoped, tag = 'internal scratch']
  #allocation2 [shape = 'f32[1,1]{1,0:T(1,128)S(6)}', space=smem, size = 0x200, scoped, tag = 'scoped memory for tpu_custom_call.1']
  %s0 = inlined_call_operand.hbm [shape: bf16[8,256,256], index: 0, kind: input, shape index: {}]
  %s1 = inlined_call_operand.vmem [shape: bf16[2048,16], index: 1, kind: input, shape index: {}]
  %s2 = inlined_call_operand.vmem [shape: f32[128,256], index: 2, kind: input, shape index: {}]
  %s3 = inlined_call_operand.vmem [shape: bf16[16,128], index: 3, kind: input, shape index: {}]
  %s4 = inlined_call_operand.vmem [shape: f32[1,128], index: 4, kind: input, shape index: {}]
  %s5 = inlined_call_operand.vmem [shape: bf16[128,128], index: 5, kind: input, shape index: {}]
  %s6 = inlined_call_operand.vmem [shape: f32[1,128], index: 6, kind: input, shape index: {}]
  %s7 = inlined_call_operand.vmem [shape: bf16[128,128], index: 7, kind: input, shape index: {}]
  %s8 = inlined_call_operand.vmem [shape: f32[1,128], index: 8, kind: input, shape index: {}]
  %s9 = inlined_call_operand.vmem [shape: f32[1,128], index: 9, kind: input, shape index: {}]
  %s10 = inlined_call_operand.<no memory space> [shape: f32[1,1], index: 10, kind: input, shape index: {}]
  %s11 = inlined_call_operand.vmem [shape: f32[128,8], index: 11, kind: output, shape index: {}]
  %s12 = sld [smem:[#allocation0]]
  $region81: #{tpu_custom_call.1} parent=0
    _
  %s14 = ssub.s32 1, %s12
  %s15 = scalar_select 0, %s14, %s12
  %16 = sst [smem:[#allocation2]] %s10
  $region1: #{tpu_custom_call.1} parent=0
    #allocation3 [shape = 'u8[262144]{0}', space=vmem, size = 0x40000, scoped, tag = 'input window, operand 0']
    #allocation4 [shape = 's32[2]{0}', space=sflag, size = 0x8, scoped, tag = 'scoped memory for tpu_custom_call.1']
    %17 = vsyncpa [#allocation4], 0
    %s18 = scalar_lea.sflag [#allocation4], 1
    %19 = vsyncpa %s18, 0
    loop: start=0, step=1, limit=10
    $region2: #{tpu_custom_call.1} parent=1 // loop_pre_header
      _
    $region3: #{tpu_custom_call.1} parent=1 // loop_header
      %s21 = sphi 0, %s25
      %p22 = scmp.ge.s32.totalorder %s21, 10
      %s31 = sphi 0, %s33
      %s34 = sphi 0, %s31
      %s35 = sphi 0, %s34
      %s51 = sphi 0, %s35
      %s57 = sphi 0, %s59
      %s60 = sphi 0, %s57
      %s61 = sphi 0, %s60
      %s77 = sphi 0, %s61
      %s83 = sphi 0, %s85
      %s86 = sphi 0, %s83
      %s87 = sphi 0, %s86
      %s103 = sphi 0, %s87
      %s107 = sphi 0, %s107
      %s109 = sphi 0, %s107
      %s110 = sphi 0, %s109
      %s124 = sphi 0, %s110
      %s128 = sphi 0, %s128
      %s130 = sphi 0, %s128
      %s131 = sphi 0, %s130
      %s145 = sphi 0, %s131
      %s149 = sphi 0, %s149
      %s151 = sphi 0, %s149
      %s152 = sphi 0, %s151
      %s166 = sphi 0, %s152
      %s170 = sphi 0, %s170
      %s172 = sphi 0, %s170
      %s173 = sphi 0, %s172
      %s187 = sphi 0, %s173
      %s191 = sphi 0, %s191
      %s193 = sphi 0, %s191
      %s194 = sphi 0, %s193
      %s208 = sphi 0, %s194
      %s212 = sphi 0, %s212
      %s214 = sphi 0, %s212
      %s215 = sphi 0, %s214
      %s229 = sphi 0, %s215
      %s233 = sphi 0, %s233
      %s235 = sphi 0, %s233
      %s236 = sphi 0, %s235
      %s250 = sphi 0, %s236
      %s254 = sphi 0, %s254
      %s256 = sphi 0, %s254
      %s257 = sphi 0, %s256
      %s271 = sphi 0, %s257
      %s277 = sphi 0, %s279
      %s280 = sphi 0, %s277
      %s281 = sphi 0, %s280
      %s297 = sphi 0, %s281
    $region4: #{tpu_custom_call.1} parent=1 // loop_header_branch
      %24 = sbr.rel (%p22) target = $region8
    $region5: #{tpu_custom_call.1} parent=1 // loop_body
      %s26 = ssub.s32 %s21, 1
      %s27 = ssub.s32 %s21, 2
      %s28 = sadd.s32 %s21, 1
      %s29 = ssub.s32 %s21, %s28
      %p30 = scmp.eq.s32.totalorder %s29, 0
      %s32 = sadd.s32 %s31, 1
      %s33 = scalar_select %p30, %s31, %s32
      %p36 = pneg %p30
      %p37 = scmp.eq.s32.totalorder %s21, 7
      %p38 = por %p36, %p37
      %p39 = scmp.ne.s32.totalorder %s31, %s34
      %p40 = scmp.eq.s32.totalorder %s21, 0
      %p41 = por %p39, %p40
      %p42 = scmp.ne.s32.totalorder %s31, %s34
      %p43 = scmp.eq.s32.totalorder %s26, 7
      %p44 = por %p42, %p43
      %p45 = scmp.ne.s32.totalorder %s34, %s35
      %p46 = scmp.eq.s32.totalorder %s26, 0
      %p47 = por %p45, %p46
      %p48 = scmp.ne.s32.totalorder %s34, %s35
      %p49 = scmp.eq.s32.totalorder %s27, 7
      %p50 = por %p48, %p49
      %p52 = scmp.ne.s32.totalorder %s35, %s51
      %p53 = scmp.eq.s32.totalorder %s27, 0
      %p54 = por %p52, %p53
      %s55 = ssub.s32 %s21, %s28
      %p56 = scmp.eq.s32.totalorder %s55, 0
      %s58 = sadd.s32 %s57, 1
      %s59 = scalar_select %p56, %s57, %s58
      %p62 = pneg %p56
      %p63 = scmp.eq.s32.totalorder %s21, 7
      %p64 = por %p62, %p63
      %p65 = scmp.ne.s32.totalorder %s57, %s60
      %p66 = scmp.eq.s32.totalorder %s21, 0
      %p67 = por %p65, %p66
      %p68 = scmp.ne.s32.totalorder %s57, %s60
      %p69 = scmp.eq.s32.totalorder %s26, 7
      %p70 = por %p68, %p69
      %p71 = scmp.ne.s32.totalorder %s60, %s61
      %p72 = scmp.eq.s32.totalorder %s26, 0
      %p73 = por %p71, %p72
      %p74 = scmp.ne.s32.totalorder %s60, %s61
      %p75 = scmp.eq.s32.totalorder %s27, 7
      %p76 = por %p74, %p75
      %p78 = scmp.ne.s32.totalorder %s61, %s77
      %p79 = scmp.eq.s32.totalorder %s27, 0
      %p80 = por %p78, %p79
      %s81 = ssub.s32 %s21, %s28
      %p82 = scmp.eq.s32.totalorder %s81, 0
      %s84 = sadd.s32 %s83, 1
      %s85 = scalar_select %p82, %s83, %s84
      %p88 = pneg %p82
      %p89 = scmp.eq.s32.totalorder %s21, 7
      %p90 = por %p88, %p89
      %p91 = scmp.ne.s32.totalorder %s83, %s86
      %p92 = scmp.eq.s32.totalorder %s21, 0
      %p93 = por %p91, %p92
      %p94 = scmp.ne.s32.totalorder %s83, %s86
      %p95 = scmp.eq.s32.totalorder %s26, 7
      %p96 = por %p94, %p95
      %p97 = scmp.ne.s32.totalorder %s86, %s87
      %p98 = scmp.eq.s32.totalorder %s26, 0
      %p99 = por %p97, %p98
      %p100 = scmp.ne.s32.totalorder %s86, %s87
      %p101 = scmp.eq.s32.totalorder %s27, 7
      %p102 = por %p100, %p101
      %p104 = scmp.ne.s32.totalorder %s87, %s103
      %p105 = scmp.eq.s32.totalorder %s27, 0
      %p106 = por %p104, %p105
      %s108 = sadd.s32 %s107, 1
      %p111 = scmp.eq.s32.totalorder %s21, 7
      %p112 = scmp.ne.s32.totalorder %s107, %s109
      %p113 = scmp.eq.s32.totalorder %s21, 0
      %p114 = por %p112, %p113
      %p115 = scmp.ne.s32.totalorder %s107, %s109
      %p116 = scmp.eq.s32.totalorder %s26, 7
      %p117 = por %p115, %p116
      %p118 = scmp.ne.s32.totalorder %s109, %s110
      %p119 = scmp.eq.s32.totalorder %s26, 0
      %p120 = por %p118, %p119
      %p121 = scmp.ne.s32.totalorder %s109, %s110
      %p122 = scmp.eq.s32.totalorder %s27, 7
      %p123 = por %p121, %p122
      %p125 = scmp.ne.s32.totalorder %s110, %s124
      %p126 = scmp.eq.s32.totalorder %s27, 0
      %p127 = por %p125, %p126
      %s129 = sadd.s32 %s128, 1
      %p132 = scmp.eq.s32.totalorder %s21, 7
      %p133 = scmp.ne.s32.totalorder %s128, %s130
      %p134 = scmp.eq.s32.totalorder %s21, 0
      %p135 = por %p133, %p134
      %p136 = scmp.ne.s32.totalorder %s128, %s130
      %p137 = scmp.eq.s32.totalorder %s26, 7
      %p138 = por %p136, %p137
      %p139 = scmp.ne.s32.totalorder %s130, %s131
      %p140 = scmp.eq.s32.totalorder %s26, 0
      %p141 = por %p139, %p140
      %p142 = scmp.ne.s32.totalorder %s130, %s131
      %p143 = scmp.eq.s32.totalorder %s27, 7
      %p144 = por %p142, %p143
      %p146 = scmp.ne.s32.totalorder %s131, %s145
      %p147 = scmp.eq.s32.totalorder %s27, 0
      %p148 = por %p146, %p147
      %s150 = sadd.s32 %s149, 1
      %p153 = scmp.eq.s32.totalorder %s21, 7
      %p154 = scmp.ne.s32.totalorder %s149, %s151
      %p155 = scmp.eq.s32.totalorder %s21, 0
      %p156 = por %p154, %p155
      %p157 = scmp.ne.s32.totalorder %s149, %s151
      %p158 = scmp.eq.s32.totalorder %s26, 7
      %p159 = por %p157, %p158
      %p160 = scmp.ne.s32.totalorder %s151, %s152
      %p161 = scmp.eq.s32.totalorder %s26, 0
      %p162 = por %p160, %p161
      %p163 = scmp.ne.s32.totalorder %s151, %s152
      %p164 = scmp.eq.s32.totalorder %s27, 7
      %p165 = por %p163, %p164
      %p167 = scmp.ne.s32.totalorder %s152, %s166
      %p168 = scmp.eq.s32.totalorder %s27, 0
      %p169 = por %p167, %p168
      %s171 = sadd.s32 %s170, 1
      %p174 = scmp.eq.s32.totalorder %s21, 7
      %p175 = scmp.ne.s32.totalorder %s170, %s172
      %p176 = scmp.eq.s32.totalorder %s21, 0
      %p177 = por %p175, %p176
      %p178 = scmp.ne.s32.totalorder %s170, %s172
      %p179 = scmp.eq.s32.totalorder %s26, 7
      %p180 = por %p178, %p179
      %p181 = scmp.ne.s32.totalorder %s172, %s173
      %p182 = scmp.eq.s32.totalorder %s26, 0
      %p183 = por %p181, %p182
      %p184 = scmp.ne.s32.totalorder %s172, %s173
      %p185 = scmp.eq.s32.totalorder %s27, 7
      %p186 = por %p184, %p185
      %p188 = scmp.ne.s32.totalorder %s173, %s187
      %p189 = scmp.eq.s32.totalorder %s27, 0
      %p190 = por %p188, %p189
      %s192 = sadd.s32 %s191, 1
      %p195 = scmp.eq.s32.totalorder %s21, 7
      %p196 = scmp.ne.s32.totalorder %s191, %s193
      %p197 = scmp.eq.s32.totalorder %s21, 0
      %p198 = por %p196, %p197
      %p199 = scmp.ne.s32.totalorder %s191, %s193
      %p200 = scmp.eq.s32.totalorder %s26, 7
      %p201 = por %p199, %p200
      %p202 = scmp.ne.s32.totalorder %s193, %s194
      %p203 = scmp.eq.s32.totalorder %s26, 0
      %p204 = por %p202, %p203
      %p205 = scmp.ne.s32.totalorder %s193, %s194
      %p206 = scmp.eq.s32.totalorder %s27, 7
      %p207 = por %p205, %p206
      %p209 = scmp.ne.s32.totalorder %s194, %s208
      %p210 = scmp.eq.s32.totalorder %s27, 0
      %p211 = por %p209, %p210
      %s213 = sadd.s32 %s212, 1
      %p216 = scmp.eq.s32.totalorder %s21, 7
      %p217 = scmp.ne.s32.totalorder %s212, %s214
      %p218 = scmp.eq.s32.totalorder %s21, 0
      %p219 = por %p217, %p218
      %p220 = scmp.ne.s32.totalorder %s212, %s214
      %p221 = scmp.eq.s32.totalorder %s26, 7
      %p222 = por %p220, %p221
      %p223 = scmp.ne.s32.totalorder %s214, %s215
      %p224 = scmp.eq.s32.totalorder %s26, 0
      %p225 = por %p223, %p224
      %p226 = scmp.ne.s32.totalorder %s214, %s215
      %p227 = scmp.eq.s32.totalorder %s27, 7
      %p228 = por %p226, %p227
      %p230 = scmp.ne.s32.totalorder %s215, %s229
      %p231 = scmp.eq.s32.totalorder %s27, 0
      %p232 = por %p230, %p231
      %s234 = sadd.s32 %s233, 1
      %p237 = scmp.eq.s32.totalorder %s21, 7
      %p238 = scmp.ne.s32.totalorder %s233, %s235
      %p239 = scmp.eq.s32.totalorder %s21, 0
      %p240 = por %p238, %p239
      %p241 = scmp.ne.s32.totalorder %s233, %s235
      %p242 = scmp.eq.s32.totalorder %s26, 7
      %p243 = por %p241, %p242
      %p244 = scmp.ne.s32.totalorder %s235, %s236
      %p245 = scmp.eq.s32.totalorder %s26, 0
      %p246 = por %p244, %p245
      %p247 = scmp.ne.s32.totalorder %s235, %s236
      %p248 = scmp.eq.s32.totalorder %s27, 7
      %p249 = por %p247, %p248
      %p251 = scmp.ne.s32.totalorder %s236, %s250
      %p252 = scmp.eq.s32.totalorder %s27, 0
      %p253 = por %p251, %p252
      %s255 = sadd.s32 %s254, 1
      %p258 = scmp.eq.s32.totalorder %s21, 7
      %p259 = scmp.ne.s32.totalorder %s254, %s256
      %p260 = scmp.eq.s32.totalorder %s21, 0
      %p261 = por %p259, %p260
      %p262 = scmp.ne.s32.totalorder %s254, %s256
      %p263 = scmp.eq.s32.totalorder %s26, 7
      %p264 = por %p262, %p263
      %p265 = scmp.ne.s32.totalorder %s256, %s257
      %p266 = scmp.eq.s32.totalorder %s26, 0
      %p267 = por %p265, %p266
      %p268 = scmp.ne.s32.totalorder %s256, %s257
      %p269 = scmp.eq.s32.totalorder %s27, 7
      %p270 = por %p268, %p269
      %p272 = scmp.ne.s32.totalorder %s257, %s271
      %p273 = scmp.eq.s32.totalorder %s27, 0
      %p274 = por %p272, %p273
      %s275 = ssub.s32 %s21, %s28
      %p276 = scmp.eq.s32.totalorder %s275, 0
      %s278 = sadd.s32 %s277, 1
      %s279 = scalar_select %p276, %s277, %s278
      %p282 = pneg %p276
      %p283 = scmp.eq.s32.totalorder %s21, 7
      %p284 = por %p282, %p283
      %p285 = scmp.ne.s32.totalorder %s277, %s280
      %p286 = scmp.eq.s32.totalorder %s21, 0
      %p287 = por %p285, %p286
      %p288 = scmp.ne.s32.totalorder %s277, %s280
      %p289 = scmp.eq.s32.totalorder %s26, 7
      %p290 = por %p288, %p289
      %p291 = scmp.ne.s32.totalorder %s280, %s281
      %p292 = scmp.eq.s32.totalorder %s26, 0
      %p293 = por %p291, %p292
      %p294 = scmp.ne.s32.totalorder %s280, %s281
      %p295 = scmp.eq.s32.totalorder %s27, 7
      %p296 = por %p294, %p295
      %p298 = scmp.ne.s32.totalorder %s281, %s297
      %p299 = scmp.eq.s32.totalorder %s27, 0
      %p300 = por %p298, %p299
      %p301 = scmp.le.s32.totalorder 1, %s21
      %p302 = scmp.lt.s32.totalorder %s21, 9
      %p303 = pnand %p301, %p302
      %p304 = pneg %p303
      // Predicated region
      $region9: #{tpu_custom_call.1} parent=5 // pred_check
        _
      $region10: #{tpu_custom_call.1} parent=5 // pred_check_branch
        %306 = sbr.rel (%p303) target = $region12
      $region11: #{tpu_custom_call.1} parent=5 // pred_region
        %s307 = ssub.s32 %s21, 1
        // Predicated region
        $region13: #{tpu_custom_call.1} parent=11 // pred_check
          %p308 = pneg %p120
        $region14: #{tpu_custom_call.1} parent=11 // pred_check_branch
          %310 = sbr.rel (%p308) target = $region16
        $region15: #{tpu_custom_call.1} parent=11 // pred_region
          _
        $region16: #{tpu_custom_call.1} parent=11 // pred_fallthru
          _
        // Predicated region
        $region17: #{tpu_custom_call.1} parent=11 // pred_check
          %p311 = pneg %p141
        $region18: #{tpu_custom_call.1} parent=11 // pred_check_branch
          %313 = sbr.rel (%p311) target = $region20
        $region19: #{tpu_custom_call.1} parent=11 // pred_region
          _
        $region20: #{tpu_custom_call.1} parent=11 // pred_fallthru
          _
        // Predicated region
        $region21: #{tpu_custom_call.1} parent=11 // pred_check
          %p314 = pneg %p162
        $region22: #{tpu_custom_call.1} parent=11 // pred_check_branch
          %316 = sbr.rel (%p314) target = $region24
        $region23: #{tpu_custom_call.1} parent=11 // pred_region
          _
        $region24: #{tpu_custom_call.1} parent=11 // pred_fallthru
          _
        // Predicated region
        $region25: #{tpu_custom_call.1} parent=11 // pred_check
          %p317 = pneg %p183
        $region26: #{tpu_custom_call.1} parent=11 // pred_check_branch
          %319 = sbr.rel (%p317) target = $region28
        $region27: #{tpu_custom_call.1} parent=11 // pred_region
          _
        $region28: #{tpu_custom_call.1} parent=11 // pred_fallthru
          _
        // Predicated region
        $region29: #{tpu_custom_call.1} parent=11 // pred_check
          %p320 = pneg %p204
        $region30: #{tpu_custom_call.1} parent=11 // pred_check_branch
          %322 = sbr.rel (%p320) target = $region32
        $region31: #{tpu_custom_call.1} parent=11 // pred_region
          _
        $region32: #{tpu_custom_call.1} parent=11 // pred_fallthru
          _
        // Predicated region
        $region33: #{tpu_custom_call.1} parent=11 // pred_check
          %p323 = pneg %p225
        $region34: #{tpu_custom_call.1} parent=11 // pred_check_branch
          %325 = sbr.rel (%p323) target = $region36
        $region35: #{tpu_custom_call.1} parent=11 // pred_region
          _
        $region36: #{tpu_custom_call.1} parent=11 // pred_fallthru
          _
        // Predicated region
        $region37: #{tpu_custom_call.1} parent=11 // pred_check
          %p326 = pneg %p246
        $region38: #{tpu_custom_call.1} parent=11 // pred_check_branch
          %328 = sbr.rel (%p326) target = $region40
        $region39: #{tpu_custom_call.1} parent=11 // pred_region
          _
        $region40: #{tpu_custom_call.1} parent=11 // pred_fallthru
          _
        // Predicated region
        $region41: #{tpu_custom_call.1} parent=11 // pred_check
          %p329 = pneg %p267
        $region42: #{tpu_custom_call.1} parent=11 // pred_check_branch
          %331 = sbr.rel (%p329) target = $region44
        $region43: #{tpu_custom_call.1} parent=11 // pred_region
          _
        $region44: #{tpu_custom_call.1} parent=11 // pred_fallthru
          _
      $region12: #{tpu_custom_call.1} parent=5 // pred_fallthru
        _
      %p332 = scmp.lt.s32.totalorder %s21, 8
      // Predicated region
      $region45: #{tpu_custom_call.1} parent=5 // pred_check
        %p333 = pneg %p332
      $region46: #{tpu_custom_call.1} parent=5 // pred_check_branch
        %335 = sbr.rel (%p333) target = $region48
      $region47: #{tpu_custom_call.1} parent=5 // pred_region
        // Predicated region
        $region49: #{tpu_custom_call.1} parent=47 // pred_check
          %p336 = pneg %p41
        $region50: #{tpu_custom_call.1} parent=47 // pred_check_branch
          %338 = sbr.rel (%p336) target = $region52
        $region51: #{tpu_custom_call.1} parent=47 // pred_region
          %s339 = sand.u32 %s31, 1
          %s340 = scalar_lea.sflag [#allocation4], %s339
          %s341 = sand.u32 %s31, 1
          %s342 = smul.addr %s341, 256
          %s343 = scalar_lea.vmem [#allocation3], %s342
          %s345 = ssub.s32 4096, 4096
          %346 = vsyncadd %s340, %s345
          %s347 = smul.addr %s21, 64
          %s348 = smul.addr %s347, 64
          %s349 = scalar_lea.hbm %s0, %s348
          %s350 = sshll.u32 %s343, 4
          %s351 = int_to_ptr.vmem [resolvable:$true] %s350
          %356 = dma.hbm_to_vmem [thread:$0]  %s349, 4096, %s351, %s340, 128, 128, 8
        $region52: #{tpu_custom_call.1} parent=47 // pred_fallthru
          _
        // Predicated region
        $region53: #{tpu_custom_call.1} parent=47 // pred_check
          %p357 = pneg %p67
        $region54: #{tpu_custom_call.1} parent=47 // pred_check_branch
          %359 = sbr.rel (%p357) target = $region56
        $region55: #{tpu_custom_call.1} parent=47 // pred_region
          %s360 = smul.u32 32, %s21
          %p361 = scmp.lt.s32.totalorder %s360, 255
          %s362 = scalar_select %p361, %s360, 255
          %s363 = smul.addr %s362, 4
          %s364 = scalar_lea.vmem %s1, %s363
          %s365 = smul.u32 32, %s21
        $region56: #{tpu_custom_call.1} parent=47 // pred_fallthru
          _
        // Predicated region
        $region57: #{tpu_custom_call.1} parent=47 // pred_check
          %p366 = pneg %p93
        $region58: #{tpu_custom_call.1} parent=47 // pred_check_branch
          %368 = sbr.rel (%p366) target = $region60
        $region59: #{tpu_custom_call.1} parent=47 // pred_region
          %s369 = smul.u32 2, %s21
          %p370 = scmp.lt.s32.totalorder %s369, 15
          %s371 = scalar_select %p370, %s369, 15
          %s372 = smul.addr %s371, 2
          %s373 = smul.addr %s372, 8
          %s374 = scalar_lea.vmem %s2, %s373
          %s375 = smul.u32 2, %s21
        $region60: #{tpu_custom_call.1} parent=47 // pred_fallthru
          _
      $region48: #{tpu_custom_call.1} parent=5 // pred_fallthru
        _
      %p376 = scmp.le.s32.totalorder 1, %s21
      %p377 = scmp.lt.s32.totalorder %s21, 9
      %p378 = pnand %p376, %p377
      %p379 = pneg %p378
      // Predicated region
      $region61: #{tpu_custom_call.1} parent=5 // pred_check
        _
      $region62: #{tpu_custom_call.1} parent=5 // pred_check_branch
        %381 = sbr.rel (%p378) target = $region64
      $region63: #{tpu_custom_call.1} parent=5 // pred_region
        %s382 = ssub.s32 %s21, 1
        %s383 = sand.u32 %s34, 1
        %s384 = scalar_lea.sflag [#allocation4], %s383
        %s385 = sand.u32 %s34, 1
        %s386 = smul.addr %s385, 256
        %s387 = scalar_lea.vmem [#allocation3], %s386
        // Predicated region
        $region65: #{tpu_custom_call.1} parent=63 // pred_check
          %p388 = pneg %p47
        $region66: #{tpu_custom_call.1} parent=63 // pred_check_branch
          %390 = sbr.rel (%p388) target = $region68
        $region67: #{tpu_custom_call.1} parent=63 // pred_region
          %391 = dma.done %s384, 4096
        $region68: #{tpu_custom_call.1} parent=63 // pred_fallthru
          _
        %s392 = sand.u32 %s34, 1
        %s393 = scalar_lea.sflag [#allocation4], %s392
        %s394 = sand.u32 %s34, 1
        %s395 = smul.addr %s394, 256
        %s396 = scalar_lea.vmem [#allocation3], %s395
        %p397 = pneg %p47
        %p398 = pneg %p44
        %s399 = smul.u32 32, %s26
        %p400 = scmp.lt.s32.totalorder %s399, 255
        %s401 = scalar_select %p400, %s399, 255
        %s402 = smul.addr %s401, 4
        %s403 = scalar_lea.vmem %s1, %s402
        %p404 = pneg %p73
        %p405 = pneg %p70
        %s406 = smul.u32 2, %s26
        %p407 = scmp.lt.s32.totalorder %s406, 15
        %s408 = scalar_select %p407, %s406, 15
        %s409 = smul.addr %s408, 2
        %s410 = smul.addr %s409, 8
        %s411 = scalar_lea.vmem %s2, %s410
        %p412 = pneg %p99
        %p413 = pneg %p96
        %p414 = pneg %p120
        %p415 = pneg %p117
        %p416 = pneg %p141
        %p417 = pneg %p138
        %p418 = pneg %p162
        %p419 = pneg %p159
        %p420 = pneg %p183
        %p421 = pneg %p180
        %p422 = pneg %p204
        %p423 = pneg %p201
        %p424 = pneg %p225
        %p425 = pneg %p222
        %p426 = pneg %p246
        %p427 = pneg %p243
        %p428 = pneg %p267
        %p429 = pneg %p264
        %p430 = pneg %p293
        %p431 = pneg %p290
        %s432 = smul.u32 2, %s26
        %p433 = scmp.lt.s32.totalorder %s432, 15
        %s434 = scalar_select %p433, %s432, 15
        %s435 = smul.addr %s434, 8
        %s436 = scalar_lea.vmem %s11, %s435
        %s437 = smul.u32 32, %s26
        %p438 = scmp.lt.s32.totalorder %s437, 255
        %s439 = scalar_select %p438, %s437, 255
        %s440 = smul.addr %s439, 4
        %s441 = scalar_lea.vmem %s1, %s440
        %s442 = smul.u32 32, %s26
        %s443 = smul.u32 2, %s26
        %p444 = scmp.lt.s32.totalorder %s443, 15
        %s445 = scalar_select %p444, %s443, 15
        %s446 = smul.addr %s445, 2
        %s447 = smul.addr %s446, 8
        %s448 = scalar_lea.vmem %s2, %s447
        %s449 = smul.u32 2, %s26
        %s450 = smul.u32 2, %s26
        %p451 = scmp.lt.s32.totalorder %s450, 15
        %s452 = scalar_select %p451, %s450, 15
        %s453 = smul.addr %s452, 8
        %s454 = scalar_lea.vmem %s11, %s453
        %s455 = smul.u32 2, %s26
        %v457 = vld [vmem:[%s387] sm:$0xff]
        %v458 = vld [vmem:[%s387 + $0x8] sm:$0xff]
        %v459 = vld [vmem:[%s387 + $0x10] sm:$0xff]
        %v460 = vld [vmem:[%s387 + $0x18] sm:$0xff]
        %v461 = vld [vmem:[%s387 + $0x20] sm:$0xff]
        %v462 = vld [vmem:[%s387 + $0x28] sm:$0xff]
        %v463 = vld [vmem:[%s387 + $0x30] sm:$0xff]
        %v464 = vld [vmem:[%s387 + $0x38] sm:$0xff]
        %v465 = vld [vmem:[%s387 + $0x40] sm:$0xff]
        %v466 = vld [vmem:[%s387 + $0x48] sm:$0xff]
        %v467 = vld [vmem:[%s387 + $0x50] sm:$0xff]
        %v468 = vld [vmem:[%s387 + $0x58] sm:$0xff]
        %v469 = vld [vmem:[%s387 + $0x60] sm:$0xff]
        %v470 = vld [vmem:[%s387 + $0x68] sm:$0xff]
        %v471 = vld [vmem:[%s387 + $0x70] sm:$0xff]
        %v472 = vld [vmem:[%s387 + $0x78] sm:$0xff]
        %v473 = vld [vmem:[%s387 + $0x80] sm:$0xff]
        %v474 = vld [vmem:[%s387 + $0x88] sm:$0xff]
        %v475 = vld [vmem:[%s387 + $0x90] sm:$0xff]
        %v476 = vld [vmem:[%s387 + $0x98] sm:$0xff]
        %v477 = vld [vmem:[%s387 + $0xa0] sm:$0xff]
        %v478 = vld [vmem:[%s387 + $0xa8] sm:$0xff]
        %v479 = vld [vmem:[%s387 + $0xb0] sm:$0xff]
        %v480 = vld [vmem:[%s387 + $0xb8] sm:$0xff]
        %v481 = vld [vmem:[%s387 + $0xc0] sm:$0xff]
        %v482 = vld [vmem:[%s387 + $0xc8] sm:$0xff]
        %v483 = vld [vmem:[%s387 + $0xd0] sm:$0xff]
        %v484 = vld [vmem:[%s387 + $0xd8] sm:$0xff]
        %v485 = vld [vmem:[%s387 + $0xe0] sm:$0xff]
        %v486 = vld [vmem:[%s387 + $0xe8] sm:$0xff]
        %v487 = vld [vmem:[%s387 + $0xf0] sm:$0xff]
        %v488 = vld [vmem:[%s387 + $0xf8] sm:$0xff]
        %v489 = vld [vmem:[%s441] sm:$0xf]
        %v490 = vld [vmem:[%s441 + $0x4] sm:$0xf]
        %v491 = vld [vmem:[%s441 + $0x8] sm:$0xf]
        %v492 = vld [vmem:[%s441 + $0xc] sm:$0xf]
        %v493 = vld [vmem:[%s441 + $0x10] sm:$0xf]
        %v494 = vld [vmem:[%s441 + $0x14] sm:$0xf]
        %v495 = vld [vmem:[%s441 + $0x18] sm:$0xf]
        %v496 = vld [vmem:[%s441 + $0x1c] sm:$0xf]
        %v497 = vld [vmem:[%s441 + $0x20] sm:$0xf]
        %v498 = vld [vmem:[%s441 + $0x24] sm:$0xf]
        %v499 = vld [vmem:[%s441 + $0x28] sm:$0xf]
        %v500 = vld [vmem:[%s441 + $0x2c] sm:$0xf]
        %v501 = vld [vmem:[%s441 + $0x30] sm:$0xf]
        %v502 = vld [vmem:[%s441 + $0x34] sm:$0xf]
        %v503 = vld [vmem:[%s441 + $0x38] sm:$0xf]
        %v504 = vld [vmem:[%s441 + $0x3c] sm:$0xf]
        %v505 = vld [vmem:[%s441 + $0x40] sm:$0xf]
        %v506 = vld [vmem:[%s441 + $0x44] sm:$0xf]
        %v507 = vld [vmem:[%s441 + $0x48] sm:$0xf]
        %v508 = vld [vmem:[%s441 + $0x4c] sm:$0xf]
        %v509 = vld [vmem:[%s441 + $0x50] sm:$0xf]
        %v510 = vld [vmem:[%s441 + $0x54] sm:$0xf]
        %v511 = vld [vmem:[%s441 + $0x58] sm:$0xf]
        %v512 = vld [vmem:[%s441 + $0x5c] sm:$0xf]
        %v513 = vld [vmem:[%s441 + $0x60] sm:$0xf]
        %v514 = vld [vmem:[%s441 + $0x64] sm:$0xf]
        %v515 = vld [vmem:[%s441 + $0x68] sm:$0xf]
        %v516 = vld [vmem:[%s441 + $0x6c] sm:$0xf]
        %v517 = vld [vmem:[%s441 + $0x70] sm:$0xf]
        %v518 = vld [vmem:[%s441 + $0x74] sm:$0xf]
        %v519 = vld [vmem:[%s441 + $0x78] sm:$0xf]
        %v520 = vld [vmem:[%s441 + $0x7c] sm:$0xf]
        %v521 = vld [vmem:[%s3] sm:$0xf]
        %v522 = vld [vmem:[%s3 + $0x4] sm:$0xf]
        %v555 = vunpack.c.l.b16 %v489
        %v556 = vunpack.c.l.b16 %v490
        %v557 = vunpack.c.l.b16 %v491
        %v558 = vunpack.c.l.b16 %v492
        %v559 = vunpack.c.l.b16 %v493
        %v560 = vunpack.c.l.b16 %v494
        %v561 = vunpack.c.l.b16 %v495
        %v562 = vunpack.c.l.b16 %v496
        %v563 = vunpack.c.l.b16 %v497
        %v564 = vunpack.c.l.b16 %v498
        %v565 = vunpack.c.l.b16 %v499
        %v566 = vunpack.c.l.b16 %v500
        %v567 = vunpack.c.l.b16 %v501
        %v568 = vunpack.c.l.b16 %v502
        %v569 = vunpack.c.l.b16 %v503
        %v570 = vunpack.c.l.b16 %v504
        %v571 = vunpack.c.l.b16 %v505
        %v572 = vunpack.c.l.b16 %v506
        %v573 = vunpack.c.l.b16 %v507
        %v574 = vunpack.c.l.b16 %v508
        %v575 = vunpack.c.l.b16 %v509
        %v576 = vunpack.c.l.b16 %v510
        %v577 = vunpack.c.l.b16 %v511
        %v578 = vunpack.c.l.b16 %v512
        %v579 = vunpack.c.l.b16 %v513
        %v580 = vunpack.c.l.b16 %v514
        %v581 = vunpack.c.l.b16 %v515
        %v582 = vunpack.c.l.b16 %v516
        %v583 = vunpack.c.l.b16 %v517
        %v584 = vunpack.c.l.b16 %v518
        %v585 = vunpack.c.l.b16 %v519
        %v586 = vunpack.c.l.b16 %v520
        %v587 = vpack.c.b16 %v556, %v555
        %v588 = vpack.c.b16 %v558, %v557
        %v589 = vpack.c.b16 %v560, %v559
        %v590 = vpack.c.b16 %v562, %v561
        %v591 = vpack.c.b16 %v564, %v563
        %v592 = vpack.c.b16 %v566, %v565
        %v593 = vpack.c.b16 %v568, %v567
        %v594 = vpack.c.b16 %v570, %v569
        %v595 = vpack.c.b16 %v572, %v571
        %v596 = vpack.c.b16 %v574, %v573
        %v597 = vpack.c.b16 %v576, %v575
        %v598 = vpack.c.b16 %v578, %v577
        %v599 = vpack.c.b16 %v580, %v579
        %v600 = vpack.c.b16 %v582, %v581
        %v601 = vpack.c.b16 %v584, %v583
        %v602 = vpack.c.b16 %v586, %v585
        %v605 = vunpack.c.l.b16 %v521
        %v606 = vunpack.c.l.b16 %v522
        %v607 = vpack.c.b16 %v606, %v605
        %vm609 = vcmask 130048
        %v611 = vsel %vm609, %v587, 0
        %v614 = vsel %vm609, %v588, 0
        %v617 = vsel %vm609, %v589, 0
        %v620 = vsel %vm609, %v590, 0
        %v623 = vsel %vm609, %v591, 0
        %v626 = vsel %vm609, %v592, 0
        %v629 = vsel %vm609, %v593, 0
        %v632 = vsel %vm609, %v594, 0
        %v635 = vsel %vm609, %v595, 0
        %v638 = vsel %vm609, %v596, 0
        %v641 = vsel %vm609, %v597, 0
        %v644 = vsel %vm609, %v598, 0
        %v647 = vsel %vm609, %v599, 0
        %v650 = vsel %vm609, %v600, 0
        %v653 = vsel %vm609, %v601, 0
        %v656 = vsel %vm609, %v602, 0
        %658 = vmatprep.subr.bf16.mxu0 0
        %659 = vmatpush1.bf16.msra.mxu0 %v607
        %660 = vmatprep.subr.bf16.mxu0 0
        %661 = vmatpush1.bf16.msra.mxu0 0
        %662 = vmatprep.subr.bf16.mxu0 0
        %663 = vmatpush1.bf16.msra.mxu0 0
        %664 = vmatprep.subr.bf16.mxu0 0
        %665 = vmatpush1.bf16.msra.mxu0 0
        %666 = vmatprep.subr.bf16.mxu0 0
        %667 = vmatpush1.bf16.msra.mxu0 0
        %668 = vmatprep.subr.bf16.mxu0 0
        %669 = vmatpush1.bf16.msra.mxu0 0
        %670 = vmatprep.subr.bf16.mxu0 0
        %671 = vmatpush1.bf16.msra.mxu0 0
        %672 = vmatprep.subr.bf16.mxu0 0
        %673 = vmatpush1.bf16.msra.mxu0 0
        %674 = vmatprep.subr.bf16.mxu0 0
        %675 = vmatpush1.bf16.msra.mxu0 0
        %676 = vmatprep.subr.bf16.mxu0 0
        %677 = vmatpush1.bf16.msra.mxu0 0
        %678 = vmatprep.subr.bf16.mxu0 0
        %679 = vmatpush1.bf16.msra.mxu0 0
        %680 = vmatprep.subr.bf16.mxu0 0
        %681 = vmatpush1.bf16.msra.mxu0 0
        %682 = vmatprep.subr.bf16.mxu0 0
        %683 = vmatpush1.bf16.msra.mxu0 0
        %684 = vmatprep.subr.bf16.mxu0 0
        %685 = vmatpush1.bf16.msra.mxu0 0
        %686 = vmatprep.subr.bf16.mxu0 0
        %687 = vmatpush1.bf16.msra.mxu0 0
        %688 = vmatprep.subr.bf16.mxu0 0
        %689 = vmatpush1.bf16.msra.mxu0 0
        %690 = vmatprep.mubr.bf16.mxu0 0
        %691 = vmatmul.mubr.bf16.gmra.mrb[0].mxu0 %v611
        %v692 = vpop.f32.mrb[0].mxu0
        %v693 = vadd.f32 0.0, %v692
        %v694 = vpop.f32.mrb[0].mxu0
        %v695 = vpop.f32.mrb[0].mxu0
        %v696 = vadd.f32 0.0, %v695
        %v697 = vpop.f32.mrb[0].mxu0
        %698 = vmatprep.mubr.bf16.mxu0 0
        %699 = vmatmul.mubr.bf16.gmra.mrb[0].mxu0 %v614
        %v700 = vpop.f32.mrb[0].mxu0
        %v701 = vadd.f32 0.0, %v700
        %v702 = vpop.f32.mrb[0].mxu0
        %v703 = vpop.f32.mrb[0].mxu0
        %v704 = vadd.f32 0.0, %v703
        %v705 = vpop.f32.mrb[0].mxu0
        %706 = vmatprep.mubr.bf16.mxu0 0
        %707 = vmatmul.mubr.bf16.gmra.mrb[0].mxu0 %v617
        %v708 = vpop.f32.mrb[0].mxu0
        %v709 = vadd.f32 0.0, %v708
        %v710 = vpop.f32.mrb[0].mxu0
        %v711 = vpop.f32.mrb[0].mxu0
        %v712 = vadd.f32 0.0, %v711
        %v713 = vpop.f32.mrb[0].mxu0
        %714 = vmatprep.mubr.bf16.mxu0 0
        %715 = vmatmul.mubr.bf16.gmra.mrb[0].mxu0 %v620
        %v716 = vpop.f32.mrb[0].mxu0
        %v717 = vadd.f32 0.0, %v716
        %v718 = vpop.f32.mrb[0].mxu0
        %v719 = vpop.f32.mrb[0].mxu0
        %v720 = vadd.f32 0.0, %v719
        %v721 = vpop.f32.mrb[0].mxu0
        %722 = vmatprep.mubr.bf16.mxu0 0
        %723 = vmatmul.mubr.bf16.gmra.mrb[0].mxu0 %v623
        %v724 = vpop.f32.mrb[0].mxu0
        %v725 = vadd.f32 0.0, %v724
        %v726 = vpop.f32.mrb[0].mxu0
        %v727 = vpop.f32.mrb[0].mxu0
        %v728 = vadd.f32 0.0, %v727
        %v729 = vpop.f32.mrb[0].mxu0
        %730 = vmatprep.mubr.bf16.mxu0 0
        %731 = vmatmul.mubr.bf16.gmra.mrb[0].mxu0 %v626
        %v732 = vpop.f32.mrb[0].mxu0
        %v733 = vadd.f32 0.0, %v732
        %v734 = vpop.f32.mrb[0].mxu0
        %v735 = vpop.f32.mrb[0].mxu0
        %v736 = vadd.f32 0.0, %v735
        %v737 = vpop.f32.mrb[0].mxu0
        %738 = vmatprep.mubr.bf16.mxu0 0
        %739 = vmatmul.mubr.bf16.gmra.mrb[0].mxu0 %v629
        %v740 = vpop.f32.mrb[0].mxu0
        %v741 = vadd.f32 0.0, %v740
        %v742 = vpop.f32.mrb[0].mxu0
        %v743 = vpop.f32.mrb[0].mxu0
        %v744 = vadd.f32 0.0, %v743
        %v745 = vpop.f32.mrb[0].mxu0
        %746 = vmatprep.mubr.bf16.mxu0 0
        %747 = vmatmul.mubr.bf16.gmra.mrb[0].mxu0 %v632
        %v748 = vpop.f32.mrb[0].mxu0
        %v749 = vadd.f32 0.0, %v748
        %v750 = vpop.f32.mrb[0].mxu0
        %v751 = vpop.f32.mrb[0].mxu0
        %v752 = vadd.f32 0.0, %v751
        %v753 = vpop.f32.mrb[0].mxu0
        %754 = vmatprep.mubr.bf16.mxu0 0
        %755 = vmatmul.mubr.bf16.gmra.mrb[0].mxu0 %v635
        %v756 = vpop.f32.mrb[0].mxu0
        %v757 = vadd.f32 0.0, %v756
        %v758 = vpop.f32.mrb[0].mxu0
        %v759 = vpop.f32.mrb[0].mxu0
        %v760 = vadd.f32 0.0, %v759
        %v761 = vpop.f32.mrb[0].mxu0
        %762 = vmatprep.mubr.bf16.mxu0 0
        %763 = vmatmul.mubr.bf16.gmra.mrb[0].mxu0 %v638
        %v764 = vpop.f32.mrb[0].mxu0
        %v765 = vadd.f32 0.0, %v764
        %v766 = vpop.f32.mrb[0].mxu0
        %v767 = vpop.f32.mrb[0].mxu0
        %v768 = vadd.f32 0.0, %v767
        %v769 = vpop.f32.mrb[0].mxu0
        %770 = vmatprep.mubr.bf16.mxu0 0
        %771 = vmatmul.mubr.bf16.gmra.mrb[0].mxu0 %v641
        %v772 = vpop.f32.mrb[0].mxu0
        %v773 = vadd.f32 0.0, %v772
        %v774 = vpop.f32.mrb[0].mxu0
        %v775 = vpop.f32.mrb[0].mxu0
        %v776 = vadd.f32 0.0, %v775
        %v777 = vpop.f32.mrb[0].mxu0
        %778 = vmatprep.mubr.bf16.mxu0 0
        %779 = vmatmul.mubr.bf16.gmra.mrb[0].mxu0 %v644
        %v780 = vpop.f32.mrb[0].mxu0
        %v781 = vadd.f32 0.0, %v780
        %v782 = vpop.f32.mrb[0].mxu0
        %v783 = vpop.f32.mrb[0].mxu0
        %v784 = vadd.f32 0.0, %v783
        %v785 = vpop.f32.mrb[0].mxu0
        %786 = vmatprep.mubr.bf16.mxu0 0
        %787 = vmatmul.mubr.bf16.gmra.mrb[0].mxu0 %v647
        %v788 = vpop.f32.mrb[0].mxu0
        %v789 = vadd.f32 0.0, %v788
        %v790 = vpop.f32.mrb[0].mxu0
        %v791 = vpop.f32.mrb[0].mxu0
        %v792 = vadd.f32 0.0, %v791
        %v793 = vpop.f32.mrb[0].mxu0
        %794 = vmatprep.mubr.bf16.mxu0 0
        %795 = vmatmul.mubr.bf16.gmra.mrb[0].mxu0 %v650
        %v796 = vpop.f32.mrb[0].mxu0
        %v797 = vadd.f32 0.0, %v796
        %v798 = vpop.f32.mrb[0].mxu0
        %v799 = vpop.f32.mrb[0].mxu0
        %v800 = vadd.f32 0.0, %v799
        %v801 = vpop.f32.mrb[0].mxu0
        %802 = vmatprep.mubr.bf16.mxu0 0
        %803 = vmatmul.mubr.bf16.gmra.mrb[0].mxu0 %v653
        %v804 = vpop.f32.mrb[0].mxu0
        %v805 = vadd.f32 0.0, %v804
        %v806 = vpop.f32.mrb[0].mxu0
        %v807 = vpop.f32.mrb[0].mxu0
        %v808 = vadd.f32 0.0, %v807
        %v809 = vpop.f32.mrb[0].mxu0
        %810 = vmatprep.mubr.bf16.mxu0 0
        %811 = vmatmul.mubr.bf16.gmra.mrb[0].mxu0 %v656
        %v812 = vpop.f32.mrb[0].mxu0
        %v813 = vadd.f32 0.0, %v812
        %v814 = vpop.f32.mrb[0].mxu0
        %v815 = vpop.f32.mrb[0].mxu0
        %v816 = vadd.f32 0.0, %v815
        %v817 = vpop.f32.mrb[0].mxu0
        %818 = vdwg.mxu0
        %v819 = vpack.c.bf16 %v696, %v693
        %v820 = vpack.c.bf16 %v704, %v701
        %v821 = vpack.c.bf16 %v712, %v709
        %v822 = vpack.c.bf16 %v720, %v717
        %v823 = vpack.c.bf16 %v728, %v725
        %v824 = vpack.c.bf16 %v736, %v733
        %v825 = vpack.c.bf16 %v744, %v741
        %v826 = vpack.c.bf16 %v752, %v749
        %v827 = vpack.c.bf16 %v760, %v757
        %v828 = vpack.c.bf16 %v768, %v765
        %v829 = vpack.c.bf16 %v776, %v773
        %v830 = vpack.c.bf16 %v784, %v781
        %v831 = vpack.c.bf16 %v792, %v789
        %v832 = vpack.c.bf16 %v800, %v797
        %v833 = vpack.c.bf16 %v808, %v805
        %v834 = vpack.c.bf16 %v816, %v813
        %v835 = vld [vmem:[%s4] sm:$0x1]
        %v837 = vlaneseq
        %v838 = vshrl.u32 %v837, 7
        %v839 = vsub.s32 0, %v838
        %v840 = vrot.slane %v835, %v839
        %v874 = vunpack.c.l.b16 %v457
        %v875 = vunpack.c.h.b16 %v457
        %v876 = vunpack.c.l.b16 %v458
        %v877 = vunpack.c.h.b16 %v458
        %v878 = vunpack.c.l.b16 %v459
        %v879 = vunpack.c.h.b16 %v459
        %v880 = vunpack.c.l.b16 %v460
        %v881 = vunpack.c.h.b16 %v460
        %v882 = vunpack.c.l.b16 %v461
        %v883 = vunpack.c.h.b16 %v461
        %v884 = vunpack.c.l.b16 %v462
        %v885 = vunpack.c.h.b16 %v462
        %v886 = vunpack.c.l.b16 %v463
        %v887 = vunpack.c.h.b16 %v463
        %v888 = vunpack.c.l.b16 %v464
        %v889 = vunpack.c.h.b16 %v464
        %v890 = vunpack.c.l.b16 %v465
        %v891 = vunpack.c.h.b16 %v465
        %v892 = vunpack.c.l.b16 %v466
        %v893 = vunpack.c.h.b16 %v466
        %v894 = vunpack.c.l.b16 %v467
        %v895 = vunpack.c.h.b16 %v467
        %v896 = vunpack.c.l.b16 %v468
        %v897 = vunpack.c.h.b16 %v468
        %v898 = vunpack.c.l.b16 %v469
        %v899 = vunpack.c.h.b16 %v469
        %v900 = vunpack.c.l.b16 %v470
        %v901 = vunpack.c.h.b16 %v470
        %v902 = vunpack.c.l.b16 %v471
        %v903 = vunpack.c.h.b16 %v471
        %v904 = vunpack.c.l.b16 %v472
        %v905 = vunpack.c.h.b16 %v472
        %v906 = vunpack.c.l.b16 %v473
        %v907 = vunpack.c.h.b16 %v473
        %v908 = vunpack.c.l.b16 %v474
        %v909 = vunpack.c.h.b16 %v474
        %v910 = vunpack.c.l.b16 %v475
        %v911 = vunpack.c.h.b16 %v475
        %v912 = vunpack.c.l.b16 %v476
        %v913 = vunpack.c.h.b16 %v476
        %v914 = vunpack.c.l.b16 %v477
        %v915 = vunpack.c.h.b16 %v477
        %v916 = vunpack.c.l.b16 %v478
        %v917 = vunpack.c.h.b16 %v478
        %v918 = vunpack.c.l.b16 %v479
        %v919 = vunpack.c.h.b16 %v479
        %v920 = vunpack.c.l.b16 %v480
        %v921 = vunpack.c.h.b16 %v480
        %v922 = vunpack.c.l.b16 %v481
        %v923 = vunpack.c.h.b16 %v481
        %v924 = vunpack.c.l.b16 %v482
        %v925 = vunpack.c.h.b16 %v482
        %v926 = vunpack.c.l.b16 %v483
        %v927 = vunpack.c.h.b16 %v483
        %v928 = vunpack.c.l.b16 %v484
        %v929 = vunpack.c.h.b16 %v484
        %v930 = vunpack.c.l.b16 %v485
        %v931 = vunpack.c.h.b16 %v485
        %v932 = vunpack.c.l.b16 %v486
        %v933 = vunpack.c.h.b16 %v486
        %v934 = vunpack.c.l.b16 %v487
        %v935 = vunpack.c.h.b16 %v487
        %v936 = vunpack.c.l.b16 %v488
        %v937 = vunpack.c.h.b16 %v488
        %v938 = vpack.c.b16 %v876, %v874
        %v939 = vpack.c.b16 %v877, %v875
        %v940 = vpack.c.b16 %v880, %v878
        %v941 = vpack.c.b16 %v881, %v879
        %v942 = vpack.c.b16 %v884, %v882
        %v943 = vpack.c.b16 %v885, %v883
        %v944 = vpack.c.b16 %v888, %v886
        %v945 = vpack.c.b16 %v889, %v887
        %v946 = vpack.c.b16 %v892, %v890
        %v947 = vpack.c.b16 %v893, %v891
        %v948 = vpack.c.b16 %v896, %v894
        %v949 = vpack.c.b16 %v897, %v895
        %v950 = vpack.c.b16 %v900, %v898
        %v951 = vpack.c.b16 %v901, %v899
        %v952 = vpack.c.b16 %v904, %v902
        %v953 = vpack.c.b16 %v905, %v903
        %v954 = vpack.c.b16 %v908, %v906
        %v955 = vpack.c.b16 %v909, %v907
        %v956 = vpack.c.b16 %v912, %v910
        %v957 = vpack.c.b16 %v913, %v911
        %v958 = vpack.c.b16 %v916, %v914
        %v959 = vpack.c.b16 %v917, %v915
        %v960 = vpack.c.b16 %v920, %v918
        %v961 = vpack.c.b16 %v921, %v919
        %v962 = vpack.c.b16 %v924, %v922
        %v963 = vpack.c.b16 %v925, %v923
        %v964 = vpack.c.b16 %v928, %v926
        %v965 = vpack.c.b16 %v929, %v927
        %v966 = vpack.c.b16 %v932, %v930
        %v967 = vpack.c.b16 %v933, %v931
        %v968 = vpack.c.b16 %v936, %v934
        %v969 = vpack.c.b16 %v937, %v935
        %1002 = vmatprep.subr.bf16.mxu0 0
        %1003 = vmatpush1.bf16.msra.mxu0 %v819
        %1004 = vmatprep.subr.bf16.mxu0 0
        %1005 = vmatpush1.bf16.msra.mxu0 %v820
        %1006 = vmatprep.subr.bf16.mxu0 0
        %1007 = vmatpush1.bf16.msra.mxu0 %v821
        %1008 = vmatprep.subr.bf16.mxu0 0
        %1009 = vmatpush1.bf16.msra.mxu0 %v822
        %1010 = vmatprep.subr.bf16.mxu0 0
        %1011 = vmatpush1.bf16.msra.mxu0 %v823
        %1012 = vmatprep.subr.bf16.mxu0 0
        %1013 = vmatpush1.bf16.msra.mxu0 %v824
        %1014 = vmatprep.subr.bf16.mxu0 0
        %1015 = vmatpush1.bf16.msra.mxu0 %v825
        %1016 = vmatprep.subr.bf16.mxu0 0
        %1017 = vmatpush1.bf16.msra.mxu0 %v826
        %1018 = vmatprep.subr.bf16.mxu0 0
        %1019 = vmatpush1.bf16.msra.mxu0 %v827
        %1020 = vmatprep.subr.bf16.mxu0 0
        %1021 = vmatpush1.bf16.msra.mxu0 %v828
        %1022 = vmatprep.subr.bf16.mxu0 0
        %1023 = vmatpush1.bf16.msra.mxu0 %v829
        %1024 = vmatprep.subr.bf16.mxu0 0
        %1025 = vmatpush1.bf16.msra.mxu0 %v830
        %1026 = vmatprep.subr.bf16.mxu0 0
        %1027 = vmatpush1.bf16.msra.mxu0 %v831
        %1028 = vmatprep.subr.bf16.mxu0 0
        %1029 = vmatpush1.bf16.msra.mxu0 %v832
        %1030 = vmatprep.subr.bf16.mxu0 0
        %1031 = vmatpush1.bf16.msra.mxu0 %v833
        %1032 = vmatprep.subr.bf16.mxu0 0
        %1033 = vmatpush1.bf16.msra.mxu0 %v834
        %1034 = vmatprep.mubr.bf16.mxu0 %v939
        %1035 = vmatmul.mubr.bf16.gmra.mrb[0].mxu0 %v938
        %v1036 = vpop.f32.mrb[0].mxu0
        %v1037 = vadd.f32 %v840, %v1036
        %v1038 = vpop.f32.mrb[0].mxu0
        %v1039 = vpop.f32.mrb[0].mxu0
        %v1040 = vadd.f32 %v840, %v1039
        %v1041 = vpop.f32.mrb[0].mxu0
        %1042 = vmatprep.mubr.bf16.mxu0 %v941
        %1043 = vmatmul.mubr.bf16.gmra.mrb[0].mxu0 %v940
        %v1044 = vpop.f32.mrb[0].mxu0
        %v1045 = vadd.f32 %v840, %v1044
        %v1046 = vpop.f32.mrb[0].mxu0
        %v1047 = vpop.f32.mrb[0].mxu0
        %v1048 = vadd.f32 %v840, %v1047
        %v1049 = vpop.f32.mrb[0].mxu0
        %1050 = vmatprep.mubr.bf16.mxu0 %v943
        %1051 = vmatmul.mubr.bf16.gmra.mrb[0].mxu0 %v942
        %v1052 = vpop.f32.mrb[0].mxu0
        %v1053 = vadd.f32 %v840, %v1052
        %v1054 = vpop.f32.mrb[0].mxu0
        %v1055 = vpop.f32.mrb[0].mxu0
        %v1056 = vadd.f32 %v840, %v1055
        %v1057 = vpop.f32.mrb[0].mxu0
        %1058 = vmatprep.mubr.bf16.mxu0 %v945
        %1059 = vmatmul.mubr.bf16.gmra.mrb[0].mxu0 %v944
        %v1060 = vpop.f32.mrb[0].mxu0
        %v1061 = vadd.f32 %v840, %v1060
        %v1062 = vpop.f32.mrb[0].mxu0
        %v1063 = vpop.f32.mrb[0].mxu0
        %v1064 = vadd.f32 %v840, %v1063
        %v1065 = vpop.f32.mrb[0].mxu0
        %1066 = vmatprep.mubr.bf16.mxu0 %v947
        %1067 = vmatmul.mubr.bf16.gmra.mrb[0].mxu0 %v946
        %v1068 = vpop.f32.mrb[0].mxu0
        %v1069 = vadd.f32 %v840, %v1068
        %v1070 = vpop.f32.mrb[0].mxu0
        %v1071 = vpop.f32.mrb[0].mxu0
        %v1072 = vadd.f32 %v840, %v1071
        %v1073 = vpop.f32.mrb[0].mxu0
        %1074 = vmatprep.mubr.bf16.mxu0 %v949
        %1075 = vmatmul.mubr.bf16.gmra.mrb[0].mxu0 %v948
        %v1076 = vpop.f32.mrb[0].mxu0
        %v1077 = vadd.f32 %v840, %v1076
        %v1078 = vpop.f32.mrb[0].mxu0
        %v1079 = vpop.f32.mrb[0].mxu0
        %v1080 = vadd.f32 %v840, %v1079
        %v1081 = vpop.f32.mrb[0].mxu0
        %1082 = vmatprep.mubr.bf16.mxu0 %v951
        %1083 = vmatmul.mubr.bf16.gmra.mrb[0].mxu0 %v950
        %v1084 = vpop.f32.mrb[0].mxu0
        %v1085 = vadd.f32 %v840, %v1084
        %v1086 = vpop.f32.mrb[0].mxu0
        %v1087 = vpop.f32.mrb[0].mxu0
        %v1088 = vadd.f32 %v840, %v1087
        %v1089 = vpop.f32.mrb[0].mxu0
        %1090 = vmatprep.mubr.bf16.mxu0 %v953
        %1091 = vmatmul.mubr.bf16.gmra.mrb[0].mxu0 %v952
        %v1092 = vpop.f32.mrb[0].mxu0
        %v1093 = vadd.f32 %v840, %v1092
        %v1094 = vpop.f32.mrb[0].mxu0
        %v1095 = vpop.f32.mrb[0].mxu0
        %v1096 = vadd.f32 %v840, %v1095
        %v1097 = vpop.f32.mrb[0].mxu0
        %1098 = vmatprep.mubr.bf16.mxu0 %v955
        %1099 = vmatmul.mubr.bf16.gmra.mrb[0].mxu0 %v954
        %v1100 = vpop.f32.mrb[0].mxu0
        %v1101 = vadd.f32 %v840, %v1100
        %v1102 = vpop.f32.mrb[0].mxu0
        %v1103 = vpop.f32.mrb[0].mxu0
        %v1104 = vadd.f32 %v840, %v1103
        %v1105 = vpop.f32.mrb[0].mxu0
        %1106 = vmatprep.mubr.bf16.mxu0 %v957
        %1107 = vmatmul.mubr.bf16.gmra.mrb[0].mxu0 %v956
        %v1108 = vpop.f32.mrb[0].mxu0
        %v1109 = vadd.f32 %v840, %v1108
        %v1110 = vpop.f32.mrb[0].mxu0
        %v1111 = vpop.f32.mrb[0].mxu0
        %v1112 = vadd.f32 %v840, %v1111
        %v1113 = vpop.f32.mrb[0].mxu0
        %1114 = vmatprep.mubr.bf16.mxu0 %v959
        %1115 = vmatmul.mubr.bf16.gmra.mrb[0].mxu0 %v958
        %v1116 = vpop.f32.mrb[0].mxu0
        %v1117 = vadd.f32 %v840, %v1116
        %v1118 = vpop.f32.mrb[0].mxu0
        %v1119 = vpop.f32.mrb[0].mxu0
        %v1120 = vadd.f32 %v840, %v1119
        %v1121 = vpop.f32.mrb[0].mxu0
        %1122 = vmatprep.mubr.bf16.mxu0 %v961
        %1123 = vmatmul.mubr.bf16.gmra.mrb[0].mxu0 %v960
        %v1124 = vpop.f32.mrb[0].mxu0
        %v1125 = vadd.f32 %v840, %v1124
        %v1126 = vpop.f32.mrb[0].mxu0
        %v1127 = vpop.f32.mrb[0].mxu0
        %v1128 = vadd.f32 %v840, %v1127
        %v1129 = vpop.f32.mrb[0].mxu0
        %1130 = vmatprep.mubr.bf16.mxu0 %v963
        %1131 = vmatmul.mubr.bf16.gmra.mrb[0].mxu0 %v962
        %v1132 = vpop.f32.mrb[0].mxu0
        %v1133 = vadd.f32 %v840, %v1132
        %v1134 = vpop.f32.mrb[0].mxu0
        %v1135 = vpop.f32.mrb[0].mxu0
        %v1136 = vadd.f32 %v840, %v1135
        %v1137 = vpop.f32.mrb[0].mxu0
        %1138 = vmatprep.mubr.bf16.mxu0 %v965
        %1139 = vmatmul.mubr.bf16.gmra.mrb[0].mxu0 %v964
        %v1140 = vpop.f32.mrb[0].mxu0
        %v1141 = vadd.f32 %v840, %v1140
        %v1142 = vpop.f32.mrb[0].mxu0
        %v1143 = vpop.f32.mrb[0].mxu0
        %v1144 = vadd.f32 %v840, %v1143
        %v1145 = vpop.f32.mrb[0].mxu0
        %1146 = vmatprep.mubr.bf16.mxu0 %v967
        %1147 = vmatmul.mubr.bf16.gmra.mrb[0].mxu0 %v966
        %v1148 = vpop.f32.mrb[0].mxu0
        %v1149 = vadd.f32 %v840, %v1148
        %v1150 = vpop.f32.mrb[0].mxu0
        %v1151 = vpop.f32.mrb[0].mxu0
        %v1152 = vadd.f32 %v840, %v1151
        %v1153 = vpop.f32.mrb[0].mxu0
        %1154 = vmatprep.mubr.bf16.mxu0 %v969
        %1155 = vmatmul.mubr.bf16.gmra.mrb[0].mxu0 %v968
        %v1156 = vpop.f32.mrb[0].mxu0
        %v1157 = vadd.f32 %v840, %v1156
        %v1158 = vpop.f32.mrb[0].mxu0
        %v1159 = vpop.f32.mrb[0].mxu0
        %v1160 = vadd.f32 %v840, %v1159
        %v1161 = vpop.f32.mrb[0].mxu0
        %1162 = vdwg.mxu0
        %v1163 = vmax.f32 %v1037, 0.0
        %v1164 = vmax.f32 %v1040, 0.0
        %v1165 = vmax.f32 %v1045, 0.0
        %v1166 = vmax.f32 %v1048, 0.0
        %v1167 = vmax.f32 %v1053, 0.0
        %v1168 = vmax.f32 %v1056, 0.0
        %v1169 = vmax.f32 %v1061, 0.0
        %v1170 = vmax.f32 %v1064, 0.0
        %v1171 = vmax.f32 %v1069, 0.0
        %v1172 = vmax.f32 %v1072, 0.0
        %v1173 = vmax.f32 %v1077, 0.0
        %v1174 = vmax.f32 %v1080, 0.0
        %v1175 = vmax.f32 %v1085, 0.0
        %v1176 = vmax.f32 %v1088, 0.0
        %v1177 = vmax.f32 %v1093, 0.0
        %v1178 = vmax.f32 %v1096, 0.0
        %v1179 = vmax.f32 %v1101, 0.0
        %v1180 = vmax.f32 %v1104, 0.0
        %v1181 = vmax.f32 %v1109, 0.0
        %v1182 = vmax.f32 %v1112, 0.0
        %v1183 = vmax.f32 %v1117, 0.0
        %v1184 = vmax.f32 %v1120, 0.0
        %v1185 = vmax.f32 %v1125, 0.0
        %v1186 = vmax.f32 %v1128, 0.0
        %v1187 = vmax.f32 %v1133, 0.0
        %v1188 = vmax.f32 %v1136, 0.0
        %v1189 = vmax.f32 %v1141, 0.0
        %v1190 = vmax.f32 %v1144, 0.0
        %v1191 = vmax.f32 %v1149, 0.0
        %v1192 = vmax.f32 %v1152, 0.0
        %v1193 = vmax.f32 %v1157, 0.0
        %v1194 = vmax.f32 %v1160, 0.0
        %v1195 = vpack.c.bf16 %v1164, %v1163
        %v1196 = vpack.c.bf16 %v1166, %v1165
        %v1197 = vpack.c.bf16 %v1168, %v1167
        %v1198 = vpack.c.bf16 %v1170, %v1169
        %v1199 = vpack.c.bf16 %v1172, %v1171
        %v1200 = vpack.c.bf16 %v1174, %v1173
        %v1201 = vpack.c.bf16 %v1176, %v1175
        %v1202 = vpack.c.bf16 %v1178, %v1177
        %v1203 = vpack.c.bf16 %v1180, %v1179
        %v1204 = vpack.c.bf16 %v1182, %v1181
        %v1205 = vpack.c.bf16 %v1184, %v1183
        %v1206 = vpack.c.bf16 %v1186, %v1185
        %v1207 = vpack.c.bf16 %v1188, %v1187
        %v1208 = vpack.c.bf16 %v1190, %v1189
        %v1209 = vpack.c.bf16 %v1192, %v1191
        %v1210 = vpack.c.bf16 %v1194, %v1193
        %v1211 = vld [vmem:[%s5] sm:$0xf]
        %v1212 = vld [vmem:[%s5 + $0x4] sm:$0xf]
        %v1213 = vld [vmem:[%s5 + $0x8] sm:$0xf]
        %v1214 = vld [vmem:[%s5 + $0xc] sm:$0xf]
        %v1215 = vld [vmem:[%s5 + $0x10] sm:$0xf]
        %v1216 = vld [vmem:[%s5 + $0x14] sm:$0xf]
        %v1217 = vld [vmem:[%s5 + $0x18] sm:$0xf]
        %v1218 = vld [vmem:[%s5 + $0x1c] sm:$0xf]
        %v1219 = vld [vmem:[%s5 + $0x20] sm:$0xf]
        %v1220 = vld [vmem:[%s5 + $0x24] sm:$0xf]
        %v1221 = vld [vmem:[%s5 + $0x28] sm:$0xf]
        %v1222 = vld [vmem:[%s5 + $0x2c] sm:$0xf]
        %v1223 = vld [vmem:[%s5 + $0x30] sm:$0xf]
        %v1224 = vld [vmem:[%s5 + $0x34] sm:$0xf]
        %v1225 = vld [vmem:[%s5 + $0x38] sm:$0xf]
        %v1226 = vld [vmem:[%s5 + $0x3c] sm:$0xf]
        %v1243 = vunpack.c.l.b16 %v1211
        %v1244 = vunpack.c.l.b16 %v1212
        %v1245 = vunpack.c.l.b16 %v1213
        %v1246 = vunpack.c.l.b16 %v1214
        %v1247 = vunpack.c.l.b16 %v1215
        %v1248 = vunpack.c.l.b16 %v1216
        %v1249 = vunpack.c.l.b16 %v1217
        %v1250 = vunpack.c.l.b16 %v1218
        %v1251 = vunpack.c.l.b16 %v1219
        %v1252 = vunpack.c.l.b16 %v1220
        %v1253 = vunpack.c.l.b16 %v1221
        %v1254 = vunpack.c.l.b16 %v1222
        %v1255 = vunpack.c.l.b16 %v1223
        %v1256 = vunpack.c.l.b16 %v1224
        %v1257 = vunpack.c.l.b16 %v1225
        %v1258 = vunpack.c.l.b16 %v1226
        %v1259 = vpack.c.b16 %v1244, %v1243
        %v1260 = vpack.c.b16 %v1246, %v1245
        %v1261 = vpack.c.b16 %v1248, %v1247
        %v1262 = vpack.c.b16 %v1250, %v1249
        %v1263 = vpack.c.b16 %v1252, %v1251
        %v1264 = vpack.c.b16 %v1254, %v1253
        %v1265 = vpack.c.b16 %v1256, %v1255
        %v1266 = vpack.c.b16 %v1258, %v1257
        %1275 = vmatprep.subr.bf16.mxu0 0
        %1276 = vmatpush1.bf16.msra.mxu0 %v1259
        %1277 = vmatprep.subr.bf16.mxu0 0
        %1278 = vmatpush1.bf16.msra.mxu0 %v1260
        %1279 = vmatprep.subr.bf16.mxu0 0
        %1280 = vmatpush1.bf16.msra.mxu0 %v1261
        %1281 = vmatprep.subr.bf16.mxu0 0
        %1282 = vmatpush1.bf16.msra.mxu0 %v1262
        %1283 = vmatprep.subr.bf16.mxu0 0
        %1284 = vmatpush1.bf16.msra.mxu0 %v1263
        %1285 = vmatprep.subr.bf16.mxu0 0
        %1286 = vmatpush1.bf16.msra.mxu0 %v1264
        %1287 = vmatprep.subr.bf16.mxu0 0
        %1288 = vmatpush1.bf16.msra.mxu0 %v1265
        %1289 = vmatprep.subr.bf16.mxu0 0
        %1290 = vmatpush1.bf16.msra.mxu0 %v1266
        %1291 = vmatprep.subr.bf16.mxu0 0
        %1292 = vmatpush1.bf16.msra.mxu0 0
        %1293 = vmatprep.subr.bf16.mxu0 0
        %1294 = vmatpush1.bf16.msra.mxu0 0
        %1295 = vmatprep.subr.bf16.mxu0 0
        %1296 = vmatpush1.bf16.msra.mxu0 0
        %1297 = vmatprep.subr.bf16.mxu0 0
        %1298 = vmatpush1.bf16.msra.mxu0 0
        %1299 = vmatprep.subr.bf16.mxu0 0
        %1300 = vmatpush1.bf16.msra.mxu0 0
        %1301 = vmatprep.subr.bf16.mxu0 0
        %1302 = vmatpush1.bf16.msra.mxu0 0
        %1303 = vmatprep.subr.bf16.mxu0 0
        %1304 = vmatpush1.bf16.msra.mxu0 0
        %1305 = vmatprep.subr.bf16.mxu0 0
        %1306 = vmatpush1.bf16.msra.mxu0 0
        %1307 = vmatprep.mubr.bf16.mxu0 0
        %1308 = vmatmul.mubr.bf16.gmra.mrb[0].mxu0 %v1195
        %v1309 = vpop.f32.mrb[0].mxu0
        %v1310 = vadd.f32 0.0, %v1309
        %v1311 = vpop.f32.mrb[0].mxu0
        %v1312 = vpop.f32.mrb[0].mxu0
        %v1313 = vadd.f32 0.0, %v1312
        %v1314 = vpop.f32.mrb[0].mxu0
        %1315 = vmatprep.mubr.bf16.mxu0 0
        %1316 = vmatmul.mubr.bf16.gmra.mrb[0].mxu0 %v1196
        %v1317 = vpop.f32.mrb[0].mxu0
        %v1318 = vadd.f32 0.0, %v1317
        %v1319 = vpop.f32.mrb[0].mxu0
        %v1320 = vpop.f32.mrb[0].mxu0
        %v1321 = vadd.f32 0.0, %v1320
        %v1322 = vpop.f32.mrb[0].mxu0
        %1323 = vmatprep.mubr.bf16.mxu0 0
        %1324 = vmatmul.mubr.bf16.gmra.mrb[0].mxu0 %v1197
        %v1325 = vpop.f32.mrb[0].mxu0
        %v1326 = vadd.f32 0.0, %v1325
        %v1327 = vpop.f32.mrb[0].mxu0
        %v1328 = vpop.f32.mrb[0].mxu0
        %v1329 = vadd.f32 0.0, %v1328
        %v1330 = vpop.f32.mrb[0].mxu0
        %1331 = vmatprep.mubr.bf16.mxu0 0
        %1332 = vmatmul.mubr.bf16.gmra.mrb[0].mxu0 %v1198
        %v1333 = vpop.f32.mrb[0].mxu0
        %v1334 = vadd.f32 0.0, %v1333
        %v1335 = vpop.f32.mrb[0].mxu0
        %v1336 = vpop.f32.mrb[0].mxu0
        %v1337 = vadd.f32 0.0, %v1336
        %v1338 = vpop.f32.mrb[0].mxu0
        %1339 = vmatprep.mubr.bf16.mxu0 0
        %1340 = vmatmul.mubr.bf16.gmra.mrb[0].mxu0 %v1199
        %v1341 = vpop.f32.mrb[0].mxu0
        %v1342 = vadd.f32 0.0, %v1341
        %v1343 = vpop.f32.mrb[0].mxu0
        %v1344 = vpop.f32.mrb[0].mxu0
        %v1345 = vadd.f32 0.0, %v1344
        %v1346 = vpop.f32.mrb[0].mxu0
        %1347 = vmatprep.mubr.bf16.mxu0 0
        %1348 = vmatmul.mubr.bf16.gmra.mrb[0].mxu0 %v1200
        %v1349 = vpop.f32.mrb[0].mxu0
        %v1350 = vadd.f32 0.0, %v1349
        %v1351 = vpop.f32.mrb[0].mxu0
        %v1352 = vpop.f32.mrb[0].mxu0
        %v1353 = vadd.f32 0.0, %v1352
        %v1354 = vpop.f32.mrb[0].mxu0
        %1355 = vmatprep.mubr.bf16.mxu0 0
        %1356 = vmatmul.mubr.bf16.gmra.mrb[0].mxu0 %v1201
        %v1357 = vpop.f32.mrb[0].mxu0
        %v1358 = vadd.f32 0.0, %v1357
        %v1359 = vpop.f32.mrb[0].mxu0
        %v1360 = vpop.f32.mrb[0].mxu0
        %v1361 = vadd.f32 0.0, %v1360
        %v1362 = vpop.f32.mrb[0].mxu0
        %1363 = vmatprep.mubr.bf16.mxu0 0
        %1364 = vmatmul.mubr.bf16.gmra.mrb[0].mxu0 %v1202
        %v1365 = vpop.f32.mrb[0].mxu0
        %v1366 = vadd.f32 0.0, %v1365
        %v1367 = vpop.f32.mrb[0].mxu0
        %v1368 = vpop.f32.mrb[0].mxu0
        %v1369 = vadd.f32 0.0, %v1368
        %v1370 = vpop.f32.mrb[0].mxu0
        %1371 = vmatprep.mubr.bf16.mxu0 0
        %1372 = vmatmul.mubr.bf16.gmra.mrb[0].mxu0 %v1203
        %v1373 = vpop.f32.mrb[0].mxu0
        %v1374 = vadd.f32 0.0, %v1373
        %v1375 = vpop.f32.mrb[0].mxu0
        %v1376 = vpop.f32.mrb[0].mxu0
        %v1377 = vadd.f32 0.0, %v1376
        %v1378 = vpop.f32.mrb[0].mxu0
        %1379 = vmatprep.mubr.bf16.mxu0 0
        %1380 = vmatmul.mubr.bf16.gmra.mrb[0].mxu0 %v1204
        %v1381 = vpop.f32.mrb[0].mxu0
        %v1382 = vadd.f32 0.0, %v1381
        %v1383 = vpop.f32.mrb[0].mxu0
        %v1384 = vpop.f32.mrb[0].mxu0
        %v1385 = vadd.f32 0.0, %v1384
        %v1386 = vpop.f32.mrb[0].mxu0
        %1387 = vmatprep.mubr.bf16.mxu0 0
        %1388 = vmatmul.mubr.bf16.gmra.mrb[0].mxu0 %v1205
        %v1389 = vpop.f32.mrb[0].mxu0
        %v1390 = vadd.f32 0.0, %v1389
        %v1391 = vpop.f32.mrb[0].mxu0
        %v1392 = vpop.f32.mrb[0].mxu0
        %v1393 = vadd.f32 0.0, %v1392
        %v1394 = vpop.f32.mrb[0].mxu0
        %1395 = vmatprep.mubr.bf16.mxu0 0
        %1396 = vmatmul.mubr.bf16.gmra.mrb[0].mxu0 %v1206
        %v1397 = vpop.f32.mrb[0].mxu0
        %v1398 = vadd.f32 0.0, %v1397
        %v1399 = vpop.f32.mrb[0].mxu0
        %v1400 = vpop.f32.mrb[0].mxu0
        %v1401 = vadd.f32 0.0, %v1400
        %v1402 = vpop.f32.mrb[0].mxu0
        %1403 = vmatprep.mubr.bf16.mxu0 0
        %1404 = vmatmul.mubr.bf16.gmra.mrb[0].mxu0 %v1207
        %v1405 = vpop.f32.mrb[0].mxu0
        %v1406 = vadd.f32 0.0, %v1405
        %v1407 = vpop.f32.mrb[0].mxu0
        %v1408 = vpop.f32.mrb[0].mxu0
        %v1409 = vadd.f32 0.0, %v1408
        %v1410 = vpop.f32.mrb[0].mxu0
        %1411 = vmatprep.mubr.bf16.mxu0 0
        %1412 = vmatmul.mubr.bf16.gmra.mrb[0].mxu0 %v1208
        %v1413 = vpop.f32.mrb[0].mxu0
        %v1414 = vadd.f32 0.0, %v1413
        %v1415 = vpop.f32.mrb[0].mxu0
        %v1416 = vpop.f32.mrb[0].mxu0
        %v1417 = vadd.f32 0.0, %v1416
        %v1418 = vpop.f32.mrb[0].mxu0
        %1419 = vmatprep.mubr.bf16.mxu0 0
        %1420 = vmatmul.mubr.bf16.gmra.mrb[0].mxu0 %v1209
        %v1421 = vpop.f32.mrb[0].mxu0
        %v1422 = vadd.f32 0.0, %v1421
        %v1423 = vpop.f32.mrb[0].mxu0
        %v1424 = vpop.f32.mrb[0].mxu0
        %v1425 = vadd.f32 0.0, %v1424
        %v1426 = vpop.f32.mrb[0].mxu0
        %1427 = vmatprep.mubr.bf16.mxu0 0
        %1428 = vmatmul.mubr.bf16.gmra.mrb[0].mxu0 %v1210
        %v1429 = vpop.f32.mrb[0].mxu0
        %v1430 = vadd.f32 0.0, %v1429
        %v1431 = vpop.f32.mrb[0].mxu0
        %v1432 = vpop.f32.mrb[0].mxu0
        %v1433 = vadd.f32 0.0, %v1432
        %v1434 = vpop.f32.mrb[0].mxu0
        %1435 = vdwg.mxu0
        %v1436 = vpack.c.bf16 %v1313, %v1310
        %v1437 = vpack.c.bf16 %v1321, %v1318
        %v1438 = vpack.c.bf16 %v1329, %v1326
        %v1439 = vpack.c.bf16 %v1337, %v1334
        %v1440 = vpack.c.bf16 %v1345, %v1342
        %v1441 = vpack.c.bf16 %v1353, %v1350
        %v1442 = vpack.c.bf16 %v1361, %v1358
        %v1443 = vpack.c.bf16 %v1369, %v1366
        %v1444 = vpack.c.bf16 %v1377, %v1374
        %v1445 = vpack.c.bf16 %v1385, %v1382
        %v1446 = vpack.c.bf16 %v1393, %v1390
        %v1447 = vpack.c.bf16 %v1401, %v1398
        %v1448 = vpack.c.bf16 %v1409, %v1406
        %v1449 = vpack.c.bf16 %v1417, %v1414
        %v1450 = vpack.c.bf16 %v1425, %v1422
        %v1451 = vpack.c.bf16 %v1433, %v1430
        %v1452 = vld [vmem:[%s6] sm:$0x1]
        %v1454 = vlaneseq
        %v1455 = vshrl.u32 %v1454, 7
        %v1456 = vsub.s32 0, %v1455
        %v1457 = vrot.slane %v1452, %v1456
        %1459 = vmatprep.subr.bf16.mxu0 0
        %1460 = vmatpush1.bf16.msra.mxu0 %v1436
        %1461 = vmatprep.subr.bf16.mxu0 0
        %1462 = vmatpush1.bf16.msra.mxu0 %v1437
        %1463 = vmatprep.subr.bf16.mxu0 0
        %1464 = vmatpush1.bf16.msra.mxu0 %v1438
        %1465 = vmatprep.subr.bf16.mxu0 0
        %1466 = vmatpush1.bf16.msra.mxu0 %v1439
        %1467 = vmatprep.subr.bf16.mxu0 0
        %1468 = vmatpush1.bf16.msra.mxu0 %v1440
        %1469 = vmatprep.subr.bf16.mxu0 0
        %1470 = vmatpush1.bf16.msra.mxu0 %v1441
        %1471 = vmatprep.subr.bf16.mxu0 0
        %1472 = vmatpush1.bf16.msra.mxu0 %v1442
        %1473 = vmatprep.subr.bf16.mxu0 0
        %1474 = vmatpush1.bf16.msra.mxu0 %v1443
        %1475 = vmatprep.subr.bf16.mxu0 0
        %1476 = vmatpush1.bf16.msra.mxu0 %v1444
        %1477 = vmatprep.subr.bf16.mxu0 0
        %1478 = vmatpush1.bf16.msra.mxu0 %v1445
        %1479 = vmatprep.subr.bf16.mxu0 0
        %1480 = vmatpush1.bf16.msra.mxu0 %v1446
        %1481 = vmatprep.subr.bf16.mxu0 0
        %1482 = vmatpush1.bf16.msra.mxu0 %v1447
        %1483 = vmatprep.subr.bf16.mxu0 0
        %1484 = vmatpush1.bf16.msra.mxu0 %v1448
        %1485 = vmatprep.subr.bf16.mxu0 0
        %1486 = vmatpush1.bf16.msra.mxu0 %v1449
        %1487 = vmatprep.subr.bf16.mxu0 0
        %1488 = vmatpush1.bf16.msra.mxu0 %v1450
        %1489 = vmatprep.subr.bf16.mxu0 0
        %1490 = vmatpush1.bf16.msra.mxu0 %v1451
        %1491 = vmatprep.mubr.bf16.mxu0 %v939
        %1492 = vmatmul.mubr.bf16.gmra.mrb[0].mxu0 %v938
        %v1493 = vpop.f32.mrb[0].mxu0
        %v1494 = vadd.f32 %v1457, %v1493
        %v1495 = vpop.f32.mrb[0].mxu0
        %v1496 = vpop.f32.mrb[0].mxu0
        %v1497 = vadd.f32 %v1457, %v1496
        %v1498 = vpop.f32.mrb[0].mxu0
        %1499 = vmatprep.mubr.bf16.mxu0 %v941
        %1500 = vmatmul.mubr.bf16.gmra.mrb[0].mxu0 %v940
        %v1501 = vpop.f32.mrb[0].mxu0
        %v1502 = vadd.f32 %v1457, %v1501
        %v1503 = vpop.f32.mrb[0].mxu0
        %v1504 = vpop.f32.mrb[0].mxu0
        %v1505 = vadd.f32 %v1457, %v1504
        %v1506 = vpop.f32.mrb[0].mxu0
        %1507 = vmatprep.mubr.bf16.mxu0 %v943
        %1508 = vmatmul.mubr.bf16.gmra.mrb[0].mxu0 %v942
        %v1509 = vpop.f32.mrb[0].mxu0
        %v1510 = vadd.f32 %v1457, %v1509
        %v1511 = vpop.f32.mrb[0].mxu0
        %v1512 = vpop.f32.mrb[0].mxu0
        %v1513 = vadd.f32 %v1457, %v1512
        %v1514 = vpop.f32.mrb[0].mxu0
        %1515 = vmatprep.mubr.bf16.mxu0 %v945
        %1516 = vmatmul.mubr.bf16.gmra.mrb[0].mxu0 %v944
        %v1517 = vpop.f32.mrb[0].mxu0
        %v1518 = vadd.f32 %v1457, %v1517
        %v1519 = vpop.f32.mrb[0].mxu0
        %v1520 = vpop.f32.mrb[0].mxu0
        %v1521 = vadd.f32 %v1457, %v1520
        %v1522 = vpop.f32.mrb[0].mxu0
        %1523 = vmatprep.mubr.bf16.mxu0 %v947
        %1524 = vmatmul.mubr.bf16.gmra.mrb[0].mxu0 %v946
        %v1525 = vpop.f32.mrb[0].mxu0
        %v1526 = vadd.f32 %v1457, %v1525
        %v1527 = vpop.f32.mrb[0].mxu0
        %v1528 = vpop.f32.mrb[0].mxu0
        %v1529 = vadd.f32 %v1457, %v1528
        %v1530 = vpop.f32.mrb[0].mxu0
        %1531 = vmatprep.mubr.bf16.mxu0 %v949
        %1532 = vmatmul.mubr.bf16.gmra.mrb[0].mxu0 %v948
        %v1533 = vpop.f32.mrb[0].mxu0
        %v1534 = vadd.f32 %v1457, %v1533
        %v1535 = vpop.f32.mrb[0].mxu0
        %v1536 = vpop.f32.mrb[0].mxu0
        %v1537 = vadd.f32 %v1457, %v1536
        %v1538 = vpop.f32.mrb[0].mxu0
        %1539 = vmatprep.mubr.bf16.mxu0 %v951
        %1540 = vmatmul.mubr.bf16.gmra.mrb[0].mxu0 %v950
        %v1541 = vpop.f32.mrb[0].mxu0
        %v1542 = vadd.f32 %v1457, %v1541
        %v1543 = vpop.f32.mrb[0].mxu0
        %v1544 = vpop.f32.mrb[0].mxu0
        %v1545 = vadd.f32 %v1457, %v1544
        %v1546 = vpop.f32.mrb[0].mxu0
        %1547 = vmatprep.mubr.bf16.mxu0 %v953
        %1548 = vmatmul.mubr.bf16.gmra.mrb[0].mxu0 %v952
        %v1549 = vpop.f32.mrb[0].mxu0
        %v1550 = vadd.f32 %v1457, %v1549
        %v1551 = vpop.f32.mrb[0].mxu0
        %v1552 = vpop.f32.mrb[0].mxu0
        %v1553 = vadd.f32 %v1457, %v1552
        %v1554 = vpop.f32.mrb[0].mxu0
        %1555 = vmatprep.mubr.bf16.mxu0 %v955
        %1556 = vmatmul.mubr.bf16.gmra.mrb[0].mxu0 %v954
        %v1557 = vpop.f32.mrb[0].mxu0
        %v1558 = vadd.f32 %v1457, %v1557
        %v1559 = vpop.f32.mrb[0].mxu0
        %v1560 = vpop.f32.mrb[0].mxu0
        %v1561 = vadd.f32 %v1457, %v1560
        %v1562 = vpop.f32.mrb[0].mxu0
        %1563 = vmatprep.mubr.bf16.mxu0 %v957
        %1564 = vmatmul.mubr.bf16.gmra.mrb[0].mxu0 %v956
        %v1565 = vpop.f32.mrb[0].mxu0
        %v1566 = vadd.f32 %v1457, %v1565
        %v1567 = vpop.f32.mrb[0].mxu0
        %v1568 = vpop.f32.mrb[0].mxu0
        %v1569 = vadd.f32 %v1457, %v1568
        %v1570 = vpop.f32.mrb[0].mxu0
        %1571 = vmatprep.mubr.bf16.mxu0 %v959
        %1572 = vmatmul.mubr.bf16.gmra.mrb[0].mxu0 %v958
        %v1573 = vpop.f32.mrb[0].mxu0
        %v1574 = vadd.f32 %v1457, %v1573
        %v1575 = vpop.f32.mrb[0].mxu0
        %v1576 = vpop.f32.mrb[0].mxu0
        %v1577 = vadd.f32 %v1457, %v1576
        %v1578 = vpop.f32.mrb[0].mxu0
        %1579 = vmatprep.mubr.bf16.mxu0 %v961
        %1580 = vmatmul.mubr.bf16.gmra.mrb[0].mxu0 %v960
        %v1581 = vpop.f32.mrb[0].mxu0
        %v1582 = vadd.f32 %v1457, %v1581
        %v1583 = vpop.f32.mrb[0].mxu0
        %v1584 = vpop.f32.mrb[0].mxu0
        %v1585 = vadd.f32 %v1457, %v1584
        %v1586 = vpop.f32.mrb[0].mxu0
        %1587 = vmatprep.mubr.bf16.mxu0 %v963
        %1588 = vmatmul.mubr.bf16.gmra.mrb[0].mxu0 %v962
        %v1589 = vpop.f32.mrb[0].mxu0
        %v1590 = vadd.f32 %v1457, %v1589
        %v1591 = vpop.f32.mrb[0].mxu0
        %v1592 = vpop.f32.mrb[0].mxu0
        %v1593 = vadd.f32 %v1457, %v1592
        %v1594 = vpop.f32.mrb[0].mxu0
        %1595 = vmatprep.mubr.bf16.mxu0 %v965
        %1596 = vmatmul.mubr.bf16.gmra.mrb[0].mxu0 %v964
        %v1597 = vpop.f32.mrb[0].mxu0
        %v1598 = vadd.f32 %v1457, %v1597
        %v1599 = vpop.f32.mrb[0].mxu0
        %v1600 = vpop.f32.mrb[0].mxu0
        %v1601 = vadd.f32 %v1457, %v1600
        %v1602 = vpop.f32.mrb[0].mxu0
        %1603 = vmatprep.mubr.bf16.mxu0 %v967
        %1604 = vmatmul.mubr.bf16.gmra.mrb[0].mxu0 %v966
        %v1605 = vpop.f32.mrb[0].mxu0
        %v1606 = vadd.f32 %v1457, %v1605
        %v1607 = vpop.f32.mrb[0].mxu0
        %v1608 = vpop.f32.mrb[0].mxu0
        %v1609 = vadd.f32 %v1457, %v1608
        %v1610 = vpop.f32.mrb[0].mxu0
        %1611 = vmatprep.mubr.bf16.mxu0 %v969
        %1612 = vmatmul.mubr.bf16.gmra.mrb[0].mxu0 %v968
        %v1613 = vpop.f32.mrb[0].mxu0
        %v1614 = vadd.f32 %v1457, %v1613
        %v1615 = vpop.f32.mrb[0].mxu0
        %v1616 = vpop.f32.mrb[0].mxu0
        %v1617 = vadd.f32 %v1457, %v1616
        %v1618 = vpop.f32.mrb[0].mxu0
        %1619 = vdwg.mxu0
        %v1620 = vmax.f32 %v1494, 0.0
        %v1621 = vmax.f32 %v1497, 0.0
        %v1622 = vmax.f32 %v1502, 0.0
        %v1623 = vmax.f32 %v1505, 0.0
        %v1624 = vmax.f32 %v1510, 0.0
        %v1625 = vmax.f32 %v1513, 0.0
        %v1626 = vmax.f32 %v1518, 0.0
        %v1627 = vmax.f32 %v1521, 0.0
        %v1628 = vmax.f32 %v1526, 0.0
        %v1629 = vmax.f32 %v1529, 0.0
        %v1630 = vmax.f32 %v1534, 0.0
        %v1631 = vmax.f32 %v1537, 0.0
        %v1632 = vmax.f32 %v1542, 0.0
        %v1633 = vmax.f32 %v1545, 0.0
        %v1634 = vmax.f32 %v1550, 0.0
        %v1635 = vmax.f32 %v1553, 0.0
        %v1636 = vmax.f32 %v1558, 0.0
        %v1637 = vmax.f32 %v1561, 0.0
        %v1638 = vmax.f32 %v1566, 0.0
        %v1639 = vmax.f32 %v1569, 0.0
        %v1640 = vmax.f32 %v1574, 0.0
        %v1641 = vmax.f32 %v1577, 0.0
        %v1642 = vmax.f32 %v1582, 0.0
        %v1643 = vmax.f32 %v1585, 0.0
        %v1644 = vmax.f32 %v1590, 0.0
        %v1645 = vmax.f32 %v1593, 0.0
        %v1646 = vmax.f32 %v1598, 0.0
        %v1647 = vmax.f32 %v1601, 0.0
        %v1648 = vmax.f32 %v1606, 0.0
        %v1649 = vmax.f32 %v1609, 0.0
        %v1650 = vmax.f32 %v1614, 0.0
        %v1651 = vmax.f32 %v1617, 0.0
        %v1652 = vld [vmem:[%s448] sm:$0xff]
        %v1653 = vld [vmem:[%s448 + $0x8] sm:$0xff]
        %v1654 = vld [vmem:[%s448 + $0x10] sm:$0xff]
        %v1655 = vld [vmem:[%s448 + $0x18] sm:$0xff]
        %1656 = vmatprep.subr.mxu0 0.0
        %1657 = vmatpush1.msra.mxu0 %v1620
        %1658 = vmatprep.subr.mxu0 0.0
        %1659 = vmatpush1.msra.mxu0 %v1621
        %1660 = vmatprep.subr.mxu0 0.0
        %1661 = vmatpush1.msra.mxu0 %v1622
        %1662 = vmatprep.subr.mxu0 0.0
        %1663 = vmatpush1.msra.mxu0 %v1623
        %1664 = vmatprep.subr.mxu0 0.0
        %1665 = vmatpush1.msra.mxu0 %v1624
        %1666 = vmatprep.subr.mxu0 0.0
        %1667 = vmatpush1.msra.mxu0 %v1625
        %1668 = vmatprep.subr.mxu0 0.0
        %1669 = vmatpush1.msra.mxu0 %v1626
        %1670 = vmatprep.subr.mxu0 0.0
        %1671 = vmatpush1.msra.mxu0 %v1627
        %1672 = vmatprep.subr.mxu0 0.0
        %1673 = vmatpush1.msra.mxu0 %v1628
        %1674 = vmatprep.subr.mxu0 0.0
        %1675 = vmatpush1.msra.mxu0 %v1629
        %1676 = vmatprep.subr.mxu0 0.0
        %1677 = vmatpush1.msra.mxu0 %v1630
        %1678 = vmatprep.subr.mxu0 0.0
        %1679 = vmatpush1.msra.mxu0 %v1631
        %1680 = vmatprep.subr.mxu0 0.0
        %1681 = vmatpush1.msra.mxu0 %v1632
        %1682 = vmatprep.subr.mxu0 0.0
        %1683 = vmatpush1.msra.mxu0 %v1633
        %1684 = vmatprep.subr.mxu0 0.0
        %1685 = vmatpush1.msra.mxu0 %v1634
        %1686 = vmatprep.subr.mxu0 0.0
        %1687 = vmatpush1.msra.mxu0 %v1635
        %1688 = vmatprep.subr.mxu0 0.0
        %1689 = vmatpush1.msra.mxu0 %v1636
        %1690 = vmatprep.subr.mxu0 0.0
        %1691 = vmatpush1.msra.mxu0 %v1637
        %1692 = vmatprep.subr.mxu0 0.0
        %1693 = vmatpush1.msra.mxu0 %v1638
        %1694 = vmatprep.subr.mxu0 0.0
        %1695 = vmatpush1.msra.mxu0 %v1639
        %1696 = vmatprep.subr.mxu0 0.0
        %1697 = vmatpush1.msra.mxu0 %v1640
        %1698 = vmatprep.subr.mxu0 0.0
        %1699 = vmatpush1.msra.mxu0 %v1641
        %1700 = vmatprep.subr.mxu0 0.0
        %1701 = vmatpush1.msra.mxu0 %v1642
        %1702 = vmatprep.subr.mxu0 0.0
        %1703 = vmatpush1.msra.mxu0 %v1643
        %1704 = vmatprep.subr.mxu0 0.0
        %1705 = vmatpush1.msra.mxu0 %v1644
        %1706 = vmatprep.subr.mxu0 0.0
        %1707 = vmatpush1.msra.mxu0 %v1645
        %1708 = vmatprep.subr.mxu0 0.0
        %1709 = vmatpush1.msra.mxu0 %v1646
        %1710 = vmatprep.subr.mxu0 0.0
        %1711 = vmatpush1.msra.mxu0 %v1647
        %1712 = vmatprep.subr.mxu0 0.0
        %1713 = vmatpush1.msra.mxu0 %v1648
        %1714 = vmatprep.subr.mxu0 0.0
        %1715 = vmatpush1.msra.mxu0 %v1649
        %1716 = vmatprep.subr.mxu0 0.0
        %1717 = vmatpush1.msra.mxu0 %v1650
        %1718 = vmatprep.subr.mxu0 0.0
        %1719 = vmatpush1.msra.mxu0 %v1651
        %1720 = vmatprep.mubr.f32.mxu0 %v1653
        %1721 = vmatmul.mubr.f32.gmra.mrb[0].mxu0 %v1652
        %v1722 = vpop.f32.mrb[0].mxu0
        %v1723 = vadd.f32 0.0, %v1722
        %v1724 = vpop.f32.mrb[0].mxu0
        %1725 = vmatprep.mubr.f32.mxu0 %v1655
        %1726 = vmatmul.mubr.f32.gmra.mrb[0].mxu0 %v1654
        %v1727 = vpop.f32.mrb[0].mxu0
        %v1728 = vadd.f32 0.0, %v1727
        %v1729 = vpop.f32.mrb[0].mxu0
        %1730 = vdwg.mxu0
        %v1731 = vpack.c.bf16 %v1728, %v1723
        %v1732 = vld [vmem:[%s7] sm:$0xf]
        %v1733 = vld [vmem:[%s7 + $0x4] sm:$0xf]
        %v1734 = vld [vmem:[%s7 + $0x8] sm:$0xf]
        %v1735 = vld [vmem:[%s7 + $0xc] sm:$0xf]
        %v1736 = vld [vmem:[%s7 + $0x10] sm:$0xf]
        %v1737 = vld [vmem:[%s7 + $0x14] sm:$0xf]
        %v1738 = vld [vmem:[%s7 + $0x18] sm:$0xf]
        %v1739 = vld [vmem:[%s7 + $0x1c] sm:$0xf]
        %v1740 = vld [vmem:[%s7 + $0x20] sm:$0xf]
        %v1741 = vld [vmem:[%s7 + $0x24] sm:$0xf]
        %v1742 = vld [vmem:[%s7 + $0x28] sm:$0xf]
        %v1743 = vld [vmem:[%s7 + $0x2c] sm:$0xf]
        %v1744 = vld [vmem:[%s7 + $0x30] sm:$0xf]
        %v1745 = vld [vmem:[%s7 + $0x34] sm:$0xf]
        %v1746 = vld [vmem:[%s7 + $0x38] sm:$0xf]
        %v1747 = vld [vmem:[%s7 + $0x3c] sm:$0xf]
        %v1748 = vld [vmem:[%s8] sm:$0x1]
        %v1750 = vlaneseq
        %v1751 = vshrl.u32 %v1750, 7
        %v1752 = vsub.s32 0, %v1751
        %v1753 = vrot.slane %v1748, %v1752
        %v1771 = vunpack.c.l.b16 %v1732
        %v1772 = vunpack.c.l.b16 %v1733
        %v1773 = vunpack.c.l.b16 %v1734
        %v1774 = vunpack.c.l.b16 %v1735
        %v1775 = vunpack.c.l.b16 %v1736
        %v1776 = vunpack.c.l.b16 %v1737
        %v1777 = vunpack.c.l.b16 %v1738
        %v1778 = vunpack.c.l.b16 %v1739
        %v1779 = vunpack.c.l.b16 %v1740
        %v1780 = vunpack.c.l.b16 %v1741
        %v1781 = vunpack.c.l.b16 %v1742
        %v1782 = vunpack.c.l.b16 %v1743
        %v1783 = vunpack.c.l.b16 %v1744
        %v1784 = vunpack.c.l.b16 %v1745
        %v1785 = vunpack.c.l.b16 %v1746
        %v1786 = vunpack.c.l.b16 %v1747
        %v1787 = vpack.c.b16 %v1772, %v1771
        %v1788 = vpack.c.b16 %v1774, %v1773
        %v1789 = vpack.c.b16 %v1776, %v1775
        %v1790 = vpack.c.b16 %v1778, %v1777
        %v1791 = vpack.c.b16 %v1780, %v1779
        %v1792 = vpack.c.b16 %v1782, %v1781
        %v1793 = vpack.c.b16 %v1784, %v1783
        %v1794 = vpack.c.b16 %v1786, %v1785
        %1803 = vmatprep.subr.bf16.mxu0 0
        %1804 = vmatpush1.bf16.msra.mxu0 %v1787
        %1805 = vmatprep.subr.bf16.mxu0 0
        %1806 = vmatpush1.bf16.msra.mxu0 %v1788
        %1807 = vmatprep.subr.bf16.mxu0 0
        %1808 = vmatpush1.bf16.msra.mxu0 %v1789
        %1809 = vmatprep.subr.bf16.mxu0 0
        %1810 = vmatpush1.bf16.msra.mxu0 %v1790
        %1811 = vmatprep.subr.bf16.mxu0 0
        %1812 = vmatpush1.bf16.msra.mxu0 %v1791
        %1813 = vmatprep.subr.bf16.mxu0 0
        %1814 = vmatpush1.bf16.msra.mxu0 %v1792
        %1815 = vmatprep.subr.bf16.mxu0 0
        %1816 = vmatpush1.bf16.msra.mxu0 %v1793
        %1817 = vmatprep.subr.bf16.mxu0 0
        %1818 = vmatpush1.bf16.msra.mxu0 %v1794
        %1819 = vmatprep.subr.bf16.mxu0 0
        %1820 = vmatpush1.bf16.msra.mxu0 0
        %1821 = vmatprep.subr.bf16.mxu0 0
        %1822 = vmatpush1.bf16.msra.mxu0 0
        %1823 = vmatprep.subr.bf16.mxu0 0
        %1824 = vmatpush1.bf16.msra.mxu0 0
        %1825 = vmatprep.subr.bf16.mxu0 0
        %1826 = vmatpush1.bf16.msra.mxu0 0
        %1827 = vmatprep.subr.bf16.mxu0 0
        %1828 = vmatpush1.bf16.msra.mxu0 0
        %1829 = vmatprep.subr.bf16.mxu0 0
        %1830 = vmatpush1.bf16.msra.mxu0 0
        %1831 = vmatprep.subr.bf16.mxu0 0
        %1832 = vmatpush1.bf16.msra.mxu0 0
        %1833 = vmatprep.subr.bf16.mxu0 0
        %1834 = vmatpush1.bf16.msra.mxu0 0
        %1835 = vmatprep.mubr.bf16.mxu0 0
        %1836 = vmatmul.mubr.bf16.gmra.mrb[0].mxu0 %v1731
        %v1837 = vpop.f32.mrb[0].mxu0
        %v1838 = vadd.f32 %v1753, %v1837
        %v1839 = vpop.f32.mrb[0].mxu0
        %v1840 = vpop.f32.mrb[0].mxu0
        %v1841 = vadd.f32 %v1753, %v1840
        %v1842 = vpop.f32.mrb[0].mxu0
        %1843 = vdwg.mxu0
        %v1844 = vmax.f32 %v1838, 0.0
        %v1845 = vmax.f32 %v1841, 0.0
        %v1846 = vld [vmem:[%s9] sm:$0x1]
        %v1848 = vlaneseq
        %v1849 = vshrl.u32 %v1848, 7
        %v1850 = vsub.s32 0, %v1849
        %v1851 = vrot.slane %v1846, %v1850
        %v1853 = vmul.f32 %v1844, %v1851
        %v1854 = vmul.f32 %v1845, %v1851
        %1855 = vadd.xlane.f32.xlu0 %v1853
        %v1856 = vpop.xlane.xlu0 %1855
        %1857 = vadd.xlane.f32.xlu0 %v1854
        %v1858 = vpop.xlane.xlu0 %1857
        %s1859 = sld [smem:[#allocation2]]
        %v1860 = vstv %s1859
        %v1861 = vadd.f32 %v1856, %v1860
        %v1862 = vadd.f32 %v1858, %v1860
        %vm1863 = vcmask 64512
        %1864 = vst.msk [vmem:[%s454] sm:$0xff] %vm1863, %v1861
        %1865 = vst.msk [vmem:[%s454 + $0x8] sm:$0xff] %vm1863, %v1862
        %s1866 = smul.u32 2, %s26
        %p1867 = scmp.lt.s32.totalorder %s1866, 15
        %s1868 = scalar_select %p1867, %s1866, 15
        %s1869 = smul.addr %s1868, 8
        %s1870 = scalar_lea.vmem %s11, %s1869
        // Predicated region
        $region69: #{tpu_custom_call.1} parent=63 // pred_check
          %p1871 = pneg %p290
        $region70: #{tpu_custom_call.1} parent=63 // pred_check_branch
          %1873 = sbr.rel (%p1871) target = $region72
        $region71: #{tpu_custom_call.1} parent=63 // pred_region
          %s1874 = smul.u32 2, %s26
        $region72: #{tpu_custom_call.1} parent=63 // pred_fallthru
          _
      $region64: #{tpu_custom_call.1} parent=5 // pred_fallthru
        _
      %p1875 = scmp.le.s32.totalorder 2, %s21
      // Predicated region
      $region73: #{tpu_custom_call.1} parent=5 // pred_check
        %p1876 = pneg %p1875
      $region74: #{tpu_custom_call.1} parent=5 // pred_check_branch
        %1878 = sbr.rel (%p1876) target = $region76
      $region75: #{tpu_custom_call.1} parent=5 // pred_region
        %s1879 = ssub.s32 %s21, 2
        // Predicated region
        $region77: #{tpu_custom_call.1} parent=75 // pred_check
          %p1880 = pneg %p296
        $region78: #{tpu_custom_call.1} parent=75 // pred_check_branch
          %1882 = sbr.rel (%p1880) target = $region80
        $region79: #{tpu_custom_call.1} parent=75 // pred_region
          %s1883 = smul.u32 2, %s27
          %p1884 = scmp.lt.s32.totalorder %s1883, 15
          %s1885 = scalar_select %p1884, %s1883, 15
          %s1886 = smul.addr %s1885, 8
          %s1887 = scalar_lea.vmem %s11, %s1886
        $region80: #{tpu_custom_call.1} parent=75 // pred_fallthru
          _
      $region76: #{tpu_custom_call.1} parent=5 // pred_fallthru
        _
    $region6: #{tpu_custom_call.1} parent=1 // loop_footer
      %s25 = sadd.s32 1, %s21
    $region7: #{tpu_custom_call.1} parent=1 // loop_footer_branch
      %20 = sbr.rel target = $region3
    $region8: #{tpu_custom_call.1} parent=1 // loop_exit
      _
    %1888 = vsyncpa [#allocation4], 1
    %s1889 = scalar_lea.sflag [#allocation4], 1
    %1890 = vsyncpa %s1889, 1

</llo_original>
